<compile_context>
chip_gen: v7x
topology: tpu7x:2x2x1
jax: 0.10.0
libtpu: 0.0.40
codegen_flags: <defaults>
</compile_context>

<pallas_src>
import functools

import numpy as np
import jax
import jax.numpy as jnp
from jax.experimental import pallas as pl
from jax.experimental.pallas import tpu as pltpu


# ----------------------------------------------------------------------------
# Parameter / filter setup (input-independent, plain JAX / numpy glue)
# ----------------------------------------------------------------------------
def make_filter_spectrum(w, kernel_size, length, mode="deconv", two_factor=True,
                         first_elem_trainable=False):
    """Mirrors Deconv1D.forward's weight processing."""
    c_out, c_in = w.shape[0], w.shape[1]
    if not first_elem_trainable:
        # F.pad(w, (1, 0), value=1): prepend a fixed 1 along the kernel axis.
        w = jnp.concatenate([jnp.ones((c_out, c_in, 1), w.dtype), w], axis=-1)
    # F.pad(w, (0, L - K)): zero-pad the taps to the signal length.
    hm1 = jnp.pad(w, ((0, 0), (0, 0), (0, length - kernel_size)))
    h1f = jnp.fft.fft2(hm1)                          # 2-D FFT over (C_in, L)
    if mode == "deconv":
        gm1f = 1.0 / h1f
    elif mode == "conv":
        gm1f = h1f
    else:
        raise NameError("Choose valid mode ie conv or deconv")
    if two_factor:
        gm2f = jnp.roll(jnp.flip(gm1f, axis=-1), shift=1, axis=-1)
        gmf = gm1f * gm2f
    else:
        gmf = gm1f
    return gmf                                       # complex64, (C_out, C_in, L)


@functools.lru_cache(maxsize=None)
def _dft_cos_sin(n):
    """cos/sin tables of the length-n DFT angles (exact integer i*j mod n, float64)."""
    idx = np.arange(n, dtype=np.int64)
    ang = 2.0 * np.pi * (np.outer(idx, idx) % n).astype(np.float64) / n
    return np.cos(ang), np.sin(ang)


def make_fused_matrix(gmf, c_in):
    """Stacked real matrices:  out[b, o*L+m] = (sum_c x[b,c,:]) @ M2[:, o*L+m].

    M_o = Re(F_L @ diag(g_o) @ IF_L) with g_o = gmf[o,0,:]/(L*sqrt(C_in)); both the
    1/L IDFT factor and the 1/sqrt(C_in) normalization are folded into g_o.
    Returned as (L, C_out*L) bf16 — the RHS of a single MXU matmul.
    """
    c_out, _, length = gmf.shape
    cos_t, sin_t = _dft_cos_sin(length)
    f_re = jnp.asarray(cos_t, jnp.float32)           # F    = f_re + i*f_im
    f_im = jnp.asarray(-sin_t, jnp.float32)
    if_re = jnp.asarray(cos_t, jnp.float32)          # IF_u = if_re + i*if_im
    if_im = jnp.asarray(sin_t, jnp.float32)

    scale = 1.0 / (float(length) * float(np.sqrt(c_in)))
    g0 = gmf[:, 0, :]
    g_re = (jnp.real(g0) * scale).astype(jnp.float32)             # (C_out, L)
    g_im = (jnp.imag(g0) * scale).astype(jnp.float32)

    # P_o = diag(g_o) @ IF  (rows of IF scaled by g_o)
    p_re = g_re[:, :, None] * if_re[None] - g_im[:, :, None] * if_im[None]   # (C_out, L, L)
    p_im = g_re[:, :, None] * if_im[None] + g_im[:, :, None] * if_re[None]
    # M_o = Re(F @ P_o) = F_re @ P_re - F_im @ P_im
    hi = jax.lax.Precision.HIGHEST
    m = (jnp.einsum("kl,olm->okm", f_re, p_re, precision=hi)
         - jnp.einsum("kl,olm->okm", f_im, p_im, precision=hi))              # (C_out, L, L)
    return jnp.transpose(m, (1, 0, 2)).reshape(length, c_out * length).astype(jnp.bfloat16)


# ----------------------------------------------------------------------------
# Generation-aware VMEM / core plan and batch-tile selection
# ----------------------------------------------------------------------------
def _tpu_plan():
    kind = ""
    try:
        kind = jax.devices()[0].device_kind.lower()
    except Exception:
        pass
    if "v2" in kind or "v3" in kind:
        return dict(vmem_limit=None, budget=12 << 20, cores=1, bf16_vpu=False)
    if "7" in kind:                       # v7x: 64 MiB VMEM per TC, 2 TCs, bf16 VPU
        return dict(vmem_limit=48 << 20, budget=48 << 20, cores=2, bf16_vpu=True)
    if "v6" in kind:                      # v6e: 128 MiB VMEM, bf16 VPU
        return dict(vmem_limit=100 << 20, budget=100 << 20, cores=1, bf16_vpu=True)
    if "v4" in kind or "v5" in kind:      # 128 MiB VMEM, no bf16 VPU (v5e)
        return dict(vmem_limit=100 << 20, budget=100 << 20, cores=1, bf16_vpu=False)
    return dict(vmem_limit=None, budget=32 << 20, cores=1, bf16_vpu=False)


def _round_up8(n):
    return ((int(n) + 7) // 8) * 8


def _pick_block_b(batch, per_row_bytes, invariant_bytes, vmem_budget, n_cores):
    """Largest batch tile (multiple of 8) that fits the VMEM budget."""
    slack = 4 << 20                                   # compiler scratch / intermediates
    avail = vmem_budget - invariant_bytes - slack
    rows = int(avail // max(per_row_bytes, 1)) if avail > 0 else 8
    bb = max(8, (rows // 8) * 8)
    batch_p = _round_up8(batch)
    bb = min(bb, batch_p)
    # Multi-TC chips only: prefer >= n_cores parallel grid steps when batch allows.
    if n_cores > 1 and batch_p >= 8 * n_cores and -(-batch_p // bb) < n_cores:
        bb = _round_up8(-(-batch_p // n_cores))
    return max(8, bb)


# ----------------------------------------------------------------------------
# Kernels
# ----------------------------------------------------------------------------
def _deconv1d_fused_kernel(x_ref, m_ref, b_ref, o_ref):
    f32 = jnp.float32
    # Channel sum == row 0 of the C_in DFT.  Accumulate in f32, feed bf16 to the MXU.
    s = jnp.sum(x_ref[...].astype(f32), axis=1).astype(jnp.bfloat16)      # (Bt, L)
    out = jnp.dot(s, m_ref[...], preferred_element_type=f32)              # (Bt, C_out*L)
    o_ref[...] = (out + b_ref[...]).astype(o_ref.dtype)                   # b: (1, C_out*L)


def _deconv1d_unfused_kernel(x_ref, gre_ref, gim_ref, flr_ref, fli_ref, b_ref,
                             o_ref, *, mul_dtype):
    f32 = jnp.float32
    bf16 = jnp.bfloat16
    bt, _, length = x_ref.shape
    c_out = gre_ref.shape[0]

    # Channel sum (f32 accumulation), bf16 MXU operand.
    s = jnp.sum(x_ref[...].astype(f32), axis=1).astype(bf16)              # (Bt, L)

    # Forward length-L DFT of the channel sum.
    xf_re = jnp.dot(s, flr_ref[...], preferred_element_type=f32)          # (Bt, L)
    xf_im = jnp.dot(s, fli_ref[...], preferred_element_type=f32)

    # Complex filter multiply; 1/(L*sqrt(C_in)) already folded into g.
    # mul_dtype is bf16 on v6e/v7x (packed bf16 VALU), f32 on v5e.
    g_re = gre_ref[...].astype(mul_dtype)                                 # (C_out, L)
    g_im = gim_ref[...].astype(mul_dtype)
    xr = xf_re.astype(mul_dtype)[:, None, :]                              # (Bt, 1, L)
    xi = xf_im.astype(mul_dtype)[:, None, :]
    y_re = g_re[None] * xr - g_im[None] * xi                              # (Bt, C_out, L)
    y_im = g_re[None] * xi + g_im[None] * xr

    # Real part of the inverse DFT reuses the forward matrices:
    #   IF_re == F_re, IF_im == -F_im  ==>  out = y_re @ F_re + y_im @ F_im
    # NOTE: reshape below is a pure layout no-op only when c_out % 8 == 0.
    y_re = y_re.reshape(bt * c_out, length).astype(bf16)
    y_im = y_im.reshape(bt * c_out, length).astype(bf16)
    out = (jnp.dot(y_re, flr_ref[...], preferred_element_type=f32)
           + jnp.dot(y_im, fli_ref[...], preferred_element_type=f32))

    o_ref[...] = (out.reshape(bt, c_out, length) + b_ref[...]).astype(o_ref.dtype)


# ----------------------------------------------------------------------------
# Wrapper
# ----------------------------------------------------------------------------
def deconv1d_pallas(x, gmf, bias, *, block_b=None, force_unfused=False):
    """x: (B, C_in, L); gmf: complex (C_out, C_in, L); bias: (C_out, 1).  Returns (B, C_out, L) f32."""
    B, c_in, L = x.shape
    c_out = gmf.shape[0]

    plan = _tpu_plan()
    cp_kwargs = dict(dimension_semantics=("parallel",))
    if plan["vmem_limit"] is not None:
        cp_kwargs["vmem_limit_bytes"] = int(plan["vmem_limit"])
    compiler_params = pltpu.CompilerParams(**cp_kwargs)

    # HBM-bound regime for typical L: stream x in bf16 (halves the dominant HBM read
    # and the x tile VMEM); the channel sum is re-accumulated in f32 inside the kernel.
    x = x.astype(jnp.bfloat16)

    fused_weight_bytes = 2 * c_out * L * L            # bf16 fused matrix, single copy
    use_fused = (not force_unfused) and (2 * fused_weight_bytes <= plan["budget"])

    if use_fused:
        m2 = make_fused_matrix(gmf, c_in)                                 # (L, C_out*L) bf16
        # Small, grid-invariant, lane-dense bias row (avoids any in-kernel relayout).
        bias_flat = jnp.broadcast_to(bias.astype(jnp.float32),
                                     (c_out, L)).reshape(1, c_out * L)

        inv_bytes = 2 * fused_weight_bytes + 2 * (4 * c_out * L)          # conservative (2x)
        per_row = 2 * (c_in * L * 2) + 2 * (c_out * L * 4) + (c_out * L * 4)
        bb = _round_up8(block_b) if block_b else _pick_block_b(
            B, per_row, inv_bytes, plan["budget"], plan["cores"])
        grid_b = -(-B // bb)
        B_pad = grid_b * bb
        if B_pad != B:
            x = jnp.pad(x, ((0, B_pad - B), (0, 0), (0, 0)))

        def call(single_buffer):
            inv = dict(pipeline_mode=pl.Buffered(1)) if single_buffer else {}
            grid_spec = pltpu.PrefetchScalarGridSpec(
                num_scalar_prefetch=0,
                grid=(grid_b,),
                in_specs=[
                    pl.BlockSpec((bb, c_in, L), lambda i: (i, 0, 0)),          # x tile
                    pl.BlockSpec((L, c_out * L), lambda i: (0, 0), **inv),     # fused matrix
                    pl.BlockSpec((1, c_out * L), lambda i: (0, 0), **inv),     # bias row
                ],
                out_specs=pl.BlockSpec((bb, c_out * L), lambda i: (i, 0)),
            )
            return pl.pallas_call(
                _deconv1d_fused_kernel,
                out_shape=jax.ShapeDtypeStruct((B_pad, c_out * L), jnp.float32),
                grid_spec=grid_spec,
                compiler_params=compiler_params,
            )(x, m2, bias_flat)

        try:
            out2d = call(True)          # single-buffered grid-invariant operands
        except Exception:
            out2d = call(False)         # fallback: default double buffering
        return out2d[:B].reshape(B, c_out, L)

    # ---- unfused fallback: DFT -> complex filter multiply -> inverse DFT ----
    scale = 1.0 / (float(L) * float(np.sqrt(c_in)))
    g0 = gmf[:, 0, :]
    g0_re = (jnp.real(g0) * scale).astype(jnp.float32)
    g0_im = (jnp.imag(g0) * scale).astype(jnp.float32)
    bias_col = bias.astype(jnp.float32).reshape(c_out, 1)

    cos_t, sin_t = _dft_cos_sin(L)
    fl_re = jnp.asarray(cos_t, jnp.bfloat16)          # also serves as IF_re
    fl_im = jnp.asarray(-sin_t, jnp.bfloat16)         # IF_im == -fl_im

    inv_bytes = 2 * (2 * 2 * L * L) + 2 * (2 * c_out * L * 4) + 2 * (c_out * 4)
    per_row = (2 * (c_in * L * 2) + 2 * (c_out * L * 4)
               + 3 * (c_out * L * 4) + 4 * L * 4)     # includes y_re/y_im/out intermediates
    bb = _round_up8(block_b) if block_b else _pick_block_b(
        B, per_row, inv_bytes, plan["budget"], plan["cores"])
    grid_b = -(-B // bb)
    B_pad = grid_b * bb
    if B_pad != B:
        x = jnp.pad(x, ((0, B_pad - B), (0, 0), (0, 0)))

    kern = functools.partial(
        _deconv1d_unfused_kernel,
        mul_dtype=jnp.bfloat16 if plan["bf16_vpu"] else jnp.float32)

    def call(single_buffer):
        inv = dict(pipeline_mode=pl.Buffered(1)) if single_buffer else {}
        grid_spec = pltpu.PrefetchScalarGridSpec(
            num_scalar_prefetch=0,
            grid=(grid_b,),
            in_specs=[
                pl.BlockSpec((bb, c_in, L), lambda i: (i, 0, 0)),          # x tile
                pl.BlockSpec((c_out, L), lambda i: (0, 0), **inv),         # g0 re
                pl.BlockSpec((c_out, L), lambda i: (0, 0), **inv),         # g0 im
                pl.BlockSpec((L, L), lambda i: (0, 0), **inv),             # F_L re (== IF re)
                pl.BlockSpec((L, L), lambda i: (0, 0), **inv),             # F_L im (== -IF im)
                pl.BlockSpec((c_out, 1), lambda i: (0, 0), **inv),         # bias column
            ],
            out_specs=pl.BlockSpec((bb, c_out, L), lambda i: (i, 0, 0)),
        )
        return pl.pallas_call(
            kern,
            out_shape=jax.ShapeDtypeStruct((B_pad, c_out, L), jnp.float32),
            grid_spec=grid_spec,
            compiler_params=compiler_params,
        )(x, g0_re, g0_im, fl_re, fl_im, bias_col)

    try:
        out = call(True)
    except Exception:
        out = call(False)
    return out[:B] if B_pad != B else out


# ----------------------------------------------------------------------------
# Pure-JAX reference (mirrors the PyTorch forward exactly)
# ----------------------------------------------------------------------------
def deconv1d_ref(x, w_tail, bias, kernel_size, mode="deconv", two_factor=True):
    B, c_in, L = x.shape
    gmf = make_filter_spectrum(w_tail, kernel_size, L, mode, two_factor)   # (C_out,C_in,L)
    xf = jnp.fft.fft2(x)                                                   # (B,C_in,L)
    ymf = gmf[None, :, :, :] * xf[:, None, :, :]                           # (B,C_out,C_in,L)
    y = jnp.real(jnp.fft.ifft2(ymf))
    y = jnp.sum(y, axis=2) / (c_in ** 0.5) + bias[None, :, :]              # (B,C_out,L)
    return y


# ----------------------------------------------------------------------------
if __name__ == "__main__":
    B, C_IN, C_OUT, K, L = 2, 8, 8, 4, 128

    key = jax.random.PRNGKey(0)
    k_w, k_b, k_x = jax.random.split(key, 3)

    # Deterministic parameter init mirroring Deconv1D.__init__ (first_elem_trainable=False).
    init_factor = K * (C_IN + C_OUT)
    w_tail = jax.random.normal(k_w, (C_OUT, C_IN, K - 1), dtype=jnp.float32) / init_factor
    bias = jax.random.uniform(k_b, (C_OUT, 1), dtype=jnp.float32) - 0.5
    x = jax.random.normal(k_x, (B, C_IN, L), dtype=jnp.float32)

    # Frequency-domain filter (input-independent parameter processing).
    gmf = make_filter_spectrum(w_tail, K, L, mode="deconv", two_factor=True)

    out_fused = jax.block_until_ready(deconv1d_pallas(x, gmf, bias))
    out_unfused = jax.block_until_ready(deconv1d_pallas(x, gmf, bias, force_unfused=True))

    ref = deconv1d_ref(x, w_tail, bias, K)
    ref_scale = float(jnp.max(jnp.abs(ref))) + 1e-6
    for name, out in (("fused", out_fused), ("unfused", out_unfused)):
        assert out.shape == (B, C_OUT, L)
        assert bool(jnp.all(jnp.isfinite(out)))
        rel_err = float(jnp.max(jnp.abs(out - ref))) / ref_scale
        assert rel_err < 0.1, f"{name} relative max error too large: {rel_err}"

    print("KERNEL_OK")
</pallas_src>

<mosaic_0001>
module attributes {stable_mosaic.version = 11 : i64} {
  func.func @_deconv1d_fused_kernel(%arg0: i32, %arg1: memref<8x8x128xbf16, #tpu.memory_space<vmem>>, %arg2: memref<128x1024xbf16, #tpu.memory_space<vmem>>, %arg3: memref<1x1024xf32, #tpu.memory_space<vmem>>, %arg4: memref<8x1024xf32, #tpu.memory_space<vmem>>) attributes {dimension_semantics = [#tpu.dimension_semantics<parallel>], iteration_bounds = array<i64: 1>, scalar_prefetch = 0 : i64, scratch_operands = 0 : i64, tpu.core_type = #tpu.core_type<tc>, window_params = [{transform_indices = @transform_0, window_bounds = array<i64: 8, 8, 128>}, {pipeline_mode = #tpu.pipeline_mode<synchronous>, transform_indices = @transform_1, window_bounds = array<i64: 128, 1024>}, {pipeline_mode = #tpu.pipeline_mode<synchronous>, transform_indices = @transform_2, window_bounds = array<i64: 1, 1024>}, {transform_indices = @transform_3, window_bounds = array<i64: 8, 1024>}]} {
    %c0 = arith.constant 0 : index
    %c0_0 = arith.constant 0 : index
    %c0_1 = arith.constant 0 : index
    %0 = vector.load %arg1[%c0, %c0_0, %c0_1] : memref<8x8x128xbf16, #tpu.memory_space<vmem>>, vector<8x8x128xbf16>
    %1 = arith.extf %0 : vector<8x8x128xbf16> to vector<8x8x128xf32>
    %cst = arith.constant dense<0.000000e+00> : vector<8x128xf32>
    %2 = vector.multi_reduction <add>, %1, %cst [1] : vector<8x8x128xf32> to vector<8x128xf32>
    %3 = arith.truncf %2 : vector<8x128xf32> to vector<8x128xbf16>
    %c0_2 = arith.constant 0 : index
    %c0_3 = arith.constant 0 : index
    %4 = vector.load %arg2[%c0_2, %c0_3] : memref<128x1024xbf16, #tpu.memory_space<vmem>>, vector<128x1024xbf16>
    %cst_4 = arith.constant dense<0.000000e+00> : vector<8x1024xf32>
    %5 = tpu.matmul %3, %4, %cst_4 {dimension_numbers = #tpu.dot_dimension_numbers<[1], [0], [0], [1], [0, 0, 1, 1], [], []>} : vector<8x128xbf16>, vector<128x1024xbf16>, vector<8x1024xf32> -> vector<8x1024xf32>
    %c0_5 = arith.constant 0 : index
    %c0_6 = arith.constant 0 : index
    %6 = vector.load %arg3[%c0_5, %c0_6] : memref<1x1024xf32, #tpu.memory_space<vmem>>, vector<1x1024xf32>
    %7 = vector.broadcast %6 : vector<1x1024xf32> to vector<8x1024xf32>
    %8 = arith.addf %5, %7 : vector<8x1024xf32>
    %c0_7 = arith.constant 0 : index
    %c0_8 = arith.constant 0 : index
    %9 = vector.load %arg4[%c0_7, %c0_8] : memref<8x1024xf32, #tpu.memory_space<vmem>>, vector<8x1024xf32>
    tpu.vector_store %arg4[%c0_7, %c0_8], %8 {strides = array<i32>} : memref<8x1024xf32, #tpu.memory_space<vmem>>, vector<8x1024xf32>,
    return
  }
  func.func @transform_0(%arg0: i32) -> (i32, i32, i32) {
    %c0_i32 = arith.constant 0 : i32
    %c0_i32_0 = arith.constant 0 : i32
    %c0_i32_1 = arith.constant 0 : i32
    return %arg0, %c0_i32, %c0_i32_0 : i32, i32, i32
  }
  func.func @transform_1(%arg0: i32) -> (i32, i32) {
    %c0_i32 = arith.constant 0 : i32
    %c0_i32_0 = arith.constant 0 : i32
    %c0_i32_1 = arith.constant 0 : i32
    return %c0_i32, %c0_i32_0 : i32, i32
  }
  func.func @transform_2(%arg0: i32) -> (i32, i32) {
    %c0_i32 = arith.constant 0 : i32
    %c0_i32_0 = arith.constant 0 : i32
    %c0_i32_1 = arith.constant 0 : i32
    return %c0_i32, %c0_i32_0 : i32, i32
  }
  func.func @transform_3(%arg0: i32) -> (i32, i32) {
    %c0_i32 = arith.constant 0 : i32
    %c0_i32_0 = arith.constant 0 : i32
    return %arg0, %c0_i32 : i32, i32
  }
}

module attributes {stable_mosaic.version = 11 : i64} {
  func.func @_deconv1d_fused_kernel(%arg0: i32, %arg1: memref<8x8x128xbf16, #tpu.memory_space<vmem>>, %arg2: memref<128x1024xbf16, #tpu.memory_space<vmem>>, %arg3: memref<1x1024xf32, #tpu.memory_space<vmem>>, %arg4: memref<8x1024xf32, #tpu.memory_space<vmem>>) attributes {dimension_semantics = [#tpu.dimension_semantics<parallel>], iteration_bounds = array<i64: 1>, scalar_prefetch = 0 : i64, scratch_operands = 0 : i64, tpu.core_type = #tpu.core_type<tc>, window_params = [{transform_indices = @transform_0, window_bounds = array<i64: 8, 8, 128>}, {pipeline_mode = #tpu.pipeline_mode<synchronous>, transform_indices = @transform_1, window_bounds = array<i64: 128, 1024>}, {pipeline_mode = #tpu.pipeline_mode<synchronous>, transform_indices = @transform_2, window_bounds = array<i64: 1, 1024>}, {transform_indices = @transform_3, window_bounds = array<i64: 8, 1024>}]} {
    %c0 = arith.constant 0 : index
    %c0_0 = arith.constant 0 : index
    %c0_1 = arith.constant 0 : index
    %0 = vector.load %arg1[%c0, %c0_0, %c0_1] : memref<8x8x128xbf16, #tpu.memory_space<vmem>>, vector<8x8x128xbf16>
    %1 = arith.extf %0 : vector<8x8x128xbf16> to vector<8x8x128xf32>
    %cst = arith.constant dense<0.000000e+00> : vector<8x128xf32>
    %2 = vector.multi_reduction <add>, %1, %cst [1] : vector<8x8x128xf32> to vector<8x128xf32>
    %3 = arith.truncf %2 : vector<8x128xf32> to vector<8x128xbf16>
    %c0_2 = arith.constant 0 : index
    %c0_3 = arith.constant 0 : index
    %4 = vector.load %arg2[%c0_2, %c0_3] : memref<128x1024xbf16, #tpu.memory_space<vmem>>, vector<128x1024xbf16>
    %cst_4 = arith.constant dense<0.000000e+00> : vector<8x1024xf32>
    %5 = tpu.matmul %3, %4, %cst_4 {dimension_numbers = #tpu.dot_dimension_numbers<[1], [0], [0], [1], [0, 0, 1, 1], [], []>} : vector<8x128xbf16>, vector<128x1024xbf16>, vector<8x1024xf32> -> vector<8x1024xf32>
    %c0_5 = arith.constant 0 : index
    %c0_6 = arith.constant 0 : index
    %6 = vector.load %arg3[%c0_5, %c0_6] : memref<1x1024xf32, #tpu.memory_space<vmem>>, vector<1x1024xf32>
    %7 = vector.broadcast %6 : vector<1x1024xf32> to vector<8x1024xf32>
    %8 = arith.addf %5, %7 : vector<8x1024xf32>
    %c0_7 = arith.constant 0 : index
    %c0_8 = arith.constant 0 : index
    %9 = vector.load %arg4[%c0_7, %c0_8] : memref<8x1024xf32, #tpu.memory_space<vmem>>, vector<8x1024xf32>
    tpu.vector_store %arg4[%c0_7, %c0_8], %8 {strides = array<i32>} : memref<8x1024xf32, #tpu.memory_space<vmem>>, vector<8x1024xf32>,
    return
  }
  func.func @transform_0(%arg0: i32) -> (i32, i32, i32) {
    %c0_i32 = arith.constant 0 : i32
    %c0_i32_0 = arith.constant 0 : i32
    %c0_i32_1 = arith.constant 0 : i32
    return %arg0, %c0_i32, %c0_i32_0 : i32, i32, i32
  }
  func.func @transform_1(%arg0: i32) -> (i32, i32) {
    %c0_i32 = arith.constant 0 : i32
    %c0_i32_0 = arith.constant 0 : i32
    %c0_i32_1 = arith.constant 0 : i32
    return %c0_i32, %c0_i32_0 : i32, i32
  }
  func.func @transform_2(%arg0: i32) -> (i32, i32) {
    %c0_i32 = arith.constant 0 : i32
    %c0_i32_0 = arith.constant 0 : i32
    %c0_i32_1 = arith.constant 0 : i32
    return %c0_i32, %c0_i32_0 : i32, i32
  }
  func.func @transform_3(%arg0: i32) -> (i32, i32) {
    %c0_i32 = arith.constant 0 : i32
    %c0_i32_0 = arith.constant 0 : i32
    return %arg0, %c0_i32 : i32, i32
  }
}

</mosaic_0001>

<llo_original>
// kernel: tpu_custom_call.1
$region0: #{tpu_custom_call.1}
  #allocation0 [shape = 'u32[]', space=smem, size = 0x4, offset = 0x4, fixed_abs, tag = 'smem constant byte address 0x4 - core index']
  #allocation1 [shape = 'u32[144,128]{1,0:T(1,128)}', space=vmem, size = 0x12000, scoped, tag = 'internal scratch']
  %s0 = inlined_call_operand.hbm [shape: bf16[8,8,128], index: 0, kind: input, shape index: {}]
  %s1 = inlined_call_operand.hbm [shape: bf16[128,1024], index: 1, kind: input, shape index: {}]
  %s2 = inlined_call_operand.hbm [shape: f32[1,1024], index: 2, kind: input, shape index: {}]
  %s3 = inlined_call_operand.hbm [shape: f32[8,1024], index: 3, kind: output, shape index: {}]
  %s4 = sld [smem:[#allocation0]]
  $region34: #{tpu_custom_call.1} parent=0
    _
  %s6 = ssub.s32 1, %s4
  %s7 = scalar_select 0, %s6, %s4
  $region1: #{tpu_custom_call.1} parent=0
    #allocation2 [shape = 'u8[16384]{0}', space=vmem, size = 0x4000, scoped, tag = 'input window, operand 0, single buffered']
    #allocation3 [shape = 's32[1]{0}', space=sflag, size = 0x4, scoped, tag = 'scoped memory for tpu_custom_call.1']
    #allocation4 [shape = 's32[1]{0}', space=sflag, size = 0x4, scoped, tag = 'scoped memory for tpu_custom_call.1']
    #allocation5 [shape = 'u8[262144]{0}', space=vmem, size = 0x40000, scoped, tag = 'input window, operand 1, single buffered']
    #allocation6 [shape = 's32[1]{0}', space=sflag, size = 0x4, scoped, tag = 'scoped memory for tpu_custom_call.1']
    #allocation7 [shape = 'u8[4096]{0}', space=vmem, size = 0x1000, scoped, tag = 'input window, operand 2, single buffered']
    #allocation8 [shape = 'u8[32768]{0}', space=vmem, size = 0x8000, scoped, tag = 'output window, operand 0, single buffered']
    %8 = vsyncpa [#allocation3], 0
    %9 = vsyncpa [#allocation6], 0
    %10 = vsyncpa [#allocation4], 0
    // Predicated region
    $region2: #{tpu_custom_call.1} parent=1 // pred_check
      _
    $region3: #{tpu_custom_call.1} parent=1 // pred_check_branch
      %12 = sbr.rel (0) target = $region5
    $region4: #{tpu_custom_call.1} parent=1 // pred_region
      %s14 = ssub.s32 512, 512
      %15 = vsyncadd [#allocation3], %s14
      %s16 = sshll.u32 [#allocation2], 4
      %s17 = int_to_ptr.vmem [resolvable:$true] %s16
      %22 = dma.hbm_to_vmem [thread:$0]  %s0, 512, %s17, [#allocation3], 64, 64, 4
    $region5: #{tpu_custom_call.1} parent=1 // pred_fallthru
      _
    // Predicated region
    $region6: #{tpu_custom_call.1} parent=1 // pred_check
      _
    $region7: #{tpu_custom_call.1} parent=1 // pred_check_branch
      %24 = sbr.rel (0) target = $region9
    $region8: #{tpu_custom_call.1} parent=1 // pred_region
      %s26 = ssub.s32 8192, 8192
      %27 = vsyncadd [#allocation6], %s26
      %s28 = sshll.u32 [#allocation5], 4
      %s29 = int_to_ptr.vmem [resolvable:$true] %s28
      %34 = dma.hbm_to_vmem [thread:$0]  %s1, 8192, %s29, [#allocation6], 512, 512, 32
    $region9: #{tpu_custom_call.1} parent=1 // pred_fallthru
      _
    // Predicated region
    $region10: #{tpu_custom_call.1} parent=1 // pred_check
      _
    $region11: #{tpu_custom_call.1} parent=1 // pred_check_branch
      %36 = sbr.rel (0) target = $region13
    $region12: #{tpu_custom_call.1} parent=1 // pred_region
      %s38 = ssub.s32 128, 128
      %39 = vsyncadd [#allocation6], %s38
      %s41 = sshll.u32 [#allocation7], 4
      %s42 = int_to_ptr.vmem [resolvable:$true] %s41
      %44 = dma.hbm_to_vmem [thread:$0]  %s2, 128, %s42, [#allocation6]
    $region13: #{tpu_custom_call.1} parent=1 // pred_fallthru
      _
    // Predicated region
    $region14: #{tpu_custom_call.1} parent=1 // pred_check
      _
    $region15: #{tpu_custom_call.1} parent=1 // pred_check_branch
      %46 = sbr.rel (0) target = $region17
    $region16: #{tpu_custom_call.1} parent=1 // pred_region
      %47 = dma.done [#allocation3], 512
    $region17: #{tpu_custom_call.1} parent=1 // pred_fallthru
      _
    // Predicated region
    $region18: #{tpu_custom_call.1} parent=1 // pred_check
      _
    $region19: #{tpu_custom_call.1} parent=1 // pred_check_branch
      %49 = sbr.rel (0) target = $region21
    $region20: #{tpu_custom_call.1} parent=1 // pred_region
      %50 = dma.done [#allocation6], 8192
    $region21: #{tpu_custom_call.1} parent=1 // pred_fallthru
      _
    // Predicated region
    $region22: #{tpu_custom_call.1} parent=1 // pred_check
      _
    $region23: #{tpu_custom_call.1} parent=1 // pred_check_branch
      %52 = sbr.rel (0) target = $region25
    $region24: #{tpu_custom_call.1} parent=1 // pred_region
      %53 = dma.done [#allocation6], 128
    $region25: #{tpu_custom_call.1} parent=1 // pred_fallthru
      _
    %v55 = vld [vmem:[#allocation2] sm:$0xf]
    %v56 = vld [vmem:[#allocation2 + $0x4] sm:$0xf]
    %v57 = vld [vmem:[#allocation2 + $0x8] sm:$0xf]
    %v58 = vld [vmem:[#allocation2 + $0xc] sm:$0xf]
    %v59 = vld [vmem:[#allocation2 + $0x10] sm:$0xf]
    %v60 = vld [vmem:[#allocation2 + $0x14] sm:$0xf]
    %v61 = vld [vmem:[#allocation2 + $0x18] sm:$0xf]
    %v62 = vld [vmem:[#allocation2 + $0x1c] sm:$0xf]
    %v63 = vunpack.c.l.bf16 %v55
    %v64 = vunpack.c.l.bf16 %v56
    %v65 = vunpack.c.l.bf16 %v57
    %v66 = vunpack.c.l.bf16 %v58
    %v67 = vunpack.c.l.bf16 %v59
    %v68 = vunpack.c.l.bf16 %v60
    %v69 = vunpack.c.l.bf16 %v61
    %v70 = vunpack.c.l.bf16 %v62
    %v71 = vrot.slane %v63, 4
    %v72 = vadd.f32 %v63, %v71
    %v73 = vrot.slane %v72, 2
    %v74 = vadd.f32 %v72, %v73
    %v75 = vrot.slane %v74, 1
    %v76 = vadd.f32 %v74, %v75
    %v77 = vrot.slane %v64, 4
    %v78 = vadd.f32 %v64, %v77
    %v79 = vrot.slane %v78, 2
    %v80 = vadd.f32 %v78, %v79
    %v81 = vrot.slane %v80, 1
    %v82 = vadd.f32 %v80, %v81
    %v83 = vrot.slane %v65, 4
    %v84 = vadd.f32 %v65, %v83
    %v85 = vrot.slane %v84, 2
    %v86 = vadd.f32 %v84, %v85
    %v87 = vrot.slane %v86, 1
    %v88 = vadd.f32 %v86, %v87
    %v89 = vrot.slane %v66, 4
    %v90 = vadd.f32 %v66, %v89
    %v91 = vrot.slane %v90, 2
    %v92 = vadd.f32 %v90, %v91
    %v93 = vrot.slane %v92, 1
    %v94 = vadd.f32 %v92, %v93
    %v95 = vrot.slane %v67, 4
    %v96 = vadd.f32 %v67, %v95
    %v97 = vrot.slane %v96, 2
    %v98 = vadd.f32 %v96, %v97
    %v99 = vrot.slane %v98, 1
    %v100 = vadd.f32 %v98, %v99
    %v101 = vrot.slane %v68, 4
    %v102 = vadd.f32 %v68, %v101
    %v103 = vrot.slane %v102, 2
    %v104 = vadd.f32 %v102, %v103
    %v105 = vrot.slane %v104, 1
    %v106 = vadd.f32 %v104, %v105
    %v107 = vrot.slane %v69, 4
    %v108 = vadd.f32 %v69, %v107
    %v109 = vrot.slane %v108, 2
    %v110 = vadd.f32 %v108, %v109
    %v111 = vrot.slane %v110, 1
    %v112 = vadd.f32 %v110, %v111
    %v113 = vrot.slane %v70, 4
    %v114 = vadd.f32 %v70, %v113
    %v115 = vrot.slane %v114, 2
    %v116 = vadd.f32 %v114, %v115
    %v117 = vrot.slane %v116, 1
    %v118 = vadd.f32 %v116, %v117
    %v119 = vpack.c.bf16 %v76, %v76
    %v120 = vpack.c.bf16 %v82, %v82
    %v121 = vpack.c.bf16 %v88, %v88
    %v122 = vpack.c.bf16 %v94, %v94
    %v123 = vpack.c.bf16 %v100, %v100
    %v124 = vpack.c.bf16 %v106, %v106
    %v125 = vpack.c.bf16 %v112, %v112
    %v126 = vpack.c.bf16 %v118, %v118
    %v127 = vld [vmem:[#allocation5] sm:$0xff]
    %v128 = vld [vmem:[#allocation5 + $0x8] sm:$0xff]
    %v129 = vld [vmem:[#allocation5 + $0x10] sm:$0xff]
    %v130 = vld [vmem:[#allocation5 + $0x18] sm:$0xff]
    %v131 = vld [vmem:[#allocation5 + $0x20] sm:$0xff]
    %v132 = vld [vmem:[#allocation5 + $0x28] sm:$0xff]
    %v133 = vld [vmem:[#allocation5 + $0x30] sm:$0xff]
    %v134 = vld [vmem:[#allocation5 + $0x38] sm:$0xff]
    %v135 = vld [vmem:[#allocation5 + $0x40] sm:$0xff]
    %v136 = vld [vmem:[#allocation5 + $0x48] sm:$0xff]
    %v137 = vld [vmem:[#allocation5 + $0x50] sm:$0xff]
    %v138 = vld [vmem:[#allocation5 + $0x58] sm:$0xff]
    %v139 = vld [vmem:[#allocation5 + $0x60] sm:$0xff]
    %v140 = vld [vmem:[#allocation5 + $0x68] sm:$0xff]
    %v141 = vld [vmem:[#allocation5 + $0x70] sm:$0xff]
    %v142 = vld [vmem:[#allocation5 + $0x78] sm:$0xff]
    %v143 = vld [vmem:[#allocation5 + $0x80] sm:$0xff]
    %v144 = vld [vmem:[#allocation5 + $0x88] sm:$0xff]
    %v145 = vld [vmem:[#allocation5 + $0x90] sm:$0xff]
    %v146 = vld [vmem:[#allocation5 + $0x98] sm:$0xff]
    %v147 = vld [vmem:[#allocation5 + $0xa0] sm:$0xff]
    %v148 = vld [vmem:[#allocation5 + $0xa8] sm:$0xff]
    %v149 = vld [vmem:[#allocation5 + $0xb0] sm:$0xff]
    %v150 = vld [vmem:[#allocation5 + $0xb8] sm:$0xff]
    %v151 = vld [vmem:[#allocation5 + $0xc0] sm:$0xff]
    %v152 = vld [vmem:[#allocation5 + $0xc8] sm:$0xff]
    %v153 = vld [vmem:[#allocation5 + $0xd0] sm:$0xff]
    %v154 = vld [vmem:[#allocation5 + $0xd8] sm:$0xff]
    %v155 = vld [vmem:[#allocation5 + $0xe0] sm:$0xff]
    %v156 = vld [vmem:[#allocation5 + $0xe8] sm:$0xff]
    %v157 = vld [vmem:[#allocation5 + $0xf0] sm:$0xff]
    %v158 = vld [vmem:[#allocation5 + $0xf8] sm:$0xff]
    %v159 = vld [vmem:[#allocation5 + $0x100] sm:$0xff]
    %v160 = vld [vmem:[#allocation5 + $0x108] sm:$0xff]
    %v161 = vld [vmem:[#allocation5 + $0x110] sm:$0xff]
    %v162 = vld [vmem:[#allocation5 + $0x118] sm:$0xff]
    %v163 = vld [vmem:[#allocation5 + $0x120] sm:$0xff]
    %v164 = vld [vmem:[#allocation5 + $0x128] sm:$0xff]
    %v165 = vld [vmem:[#allocation5 + $0x130] sm:$0xff]
    %v166 = vld [vmem:[#allocation5 + $0x138] sm:$0xff]
    %v167 = vld [vmem:[#allocation5 + $0x140] sm:$0xff]
    %v168 = vld [vmem:[#allocation5 + $0x148] sm:$0xff]
    %v169 = vld [vmem:[#allocation5 + $0x150] sm:$0xff]
    %v170 = vld [vmem:[#allocation5 + $0x158] sm:$0xff]
    %v171 = vld [vmem:[#allocation5 + $0x160] sm:$0xff]
    %v172 = vld [vmem:[#allocation5 + $0x168] sm:$0xff]
    %v173 = vld [vmem:[#allocation5 + $0x170] sm:$0xff]
    %v174 = vld [vmem:[#allocation5 + $0x178] sm:$0xff]
    %v175 = vld [vmem:[#allocation5 + $0x180] sm:$0xff]
    %v176 = vld [vmem:[#allocation5 + $0x188] sm:$0xff]
    %v177 = vld [vmem:[#allocation5 + $0x190] sm:$0xff]
    %v178 = vld [vmem:[#allocation5 + $0x198] sm:$0xff]
    %v179 = vld [vmem:[#allocation5 + $0x1a0] sm:$0xff]
    %v180 = vld [vmem:[#allocation5 + $0x1a8] sm:$0xff]
    %v181 = vld [vmem:[#allocation5 + $0x1b0] sm:$0xff]
    %v182 = vld [vmem:[#allocation5 + $0x1b8] sm:$0xff]
    %v183 = vld [vmem:[#allocation5 + $0x1c0] sm:$0xff]
    %v184 = vld [vmem:[#allocation5 + $0x1c8] sm:$0xff]
    %v185 = vld [vmem:[#allocation5 + $0x1d0] sm:$0xff]
    %v186 = vld [vmem:[#allocation5 + $0x1d8] sm:$0xff]
    %v187 = vld [vmem:[#allocation5 + $0x1e0] sm:$0xff]
    %v188 = vld [vmem:[#allocation5 + $0x1e8] sm:$0xff]
    %v189 = vld [vmem:[#allocation5 + $0x1f0] sm:$0xff]
    %v190 = vld [vmem:[#allocation5 + $0x1f8] sm:$0xff]
    %v191 = vld [vmem:[#allocation7] sm:$0xff]
    %v193 = vlaneseq
    %v194 = vshrl.u32 %v193, 7
    %v195 = vsub.s32 0, %v194
    %v196 = vrot.slane %v191, %v195
    %v197 = vlaneseq
    %v198 = vshrl.u32 %v197, 7
    %v199 = vsub.s32 1, %v198
    %v200 = vrot.slane %v191, %v199
    %v201 = vlaneseq
    %v202 = vshrl.u32 %v201, 7
    %v203 = vsub.s32 2, %v202
    %v204 = vrot.slane %v191, %v203
    %v205 = vlaneseq
    %v206 = vshrl.u32 %v205, 7
    %v207 = vsub.s32 3, %v206
    %v208 = vrot.slane %v191, %v207
    %v209 = vlaneseq
    %v210 = vshrl.u32 %v209, 7
    %v211 = vsub.s32 4, %v210
    %v212 = vrot.slane %v191, %v211
    %v213 = vlaneseq
    %v214 = vshrl.u32 %v213, 7
    %v215 = vsub.s32 5, %v214
    %v216 = vrot.slane %v191, %v215
    %v217 = vlaneseq
    %v218 = vshrl.u32 %v217, 7
    %v219 = vsub.s32 6, %v218
    %v220 = vrot.slane %v191, %v219
    %v221 = vlaneseq
    %v222 = vshrl.u32 %v221, 7
    %v223 = vsub.s32 7, %v222
    %v224 = vrot.slane %v191, %v223
    %v241 = vunpack.c.l.b16 %v119
    %v242 = vunpack.c.l.b16 %v120
    %v243 = vunpack.c.l.b16 %v121
    %v244 = vunpack.c.l.b16 %v122
    %v245 = vunpack.c.l.b16 %v123
    %v246 = vunpack.c.l.b16 %v124
    %v247 = vunpack.c.l.b16 %v125
    %v248 = vunpack.c.l.b16 %v126
    %vm249 = vcmask 1041409
    %v250 = vsel %vm249, %v242, %v241
    %vm251 = vcmask 1042434
    %v252 = vsel %vm251, %v243, %v250
    %vm253 = vcmask 1043459
    %v254 = vsel %vm253, %v244, %v252
    %vm255 = vcmask 1044484
    %v256 = vsel %vm255, %v245, %v254
    %vm257 = vcmask 1045509
    %v258 = vsel %vm257, %v246, %v256
    %vm259 = vcmask 1046534
    %v260 = vsel %vm259, %v247, %v258
    %vm261 = vcmask 1047559
    %v262 = vsel %vm261, %v248, %v260
    %v263 = vpack.c.b16 %v262, %v262
    %v329 = vunpack.c.l.b16 %v127
    %v330 = vunpack.c.h.b16 %v127
    %v331 = vunpack.c.l.b16 %v128
    %v332 = vunpack.c.h.b16 %v128
    %v333 = vunpack.c.l.b16 %v129
    %v334 = vunpack.c.h.b16 %v129
    %v335 = vunpack.c.l.b16 %v130
    %v336 = vunpack.c.h.b16 %v130
    %v337 = vunpack.c.l.b16 %v131
    %v338 = vunpack.c.h.b16 %v131
    %v339 = vunpack.c.l.b16 %v132
    %v340 = vunpack.c.h.b16 %v132
    %v341 = vunpack.c.l.b16 %v133
    %v342 = vunpack.c.h.b16 %v133
    %v343 = vunpack.c.l.b16 %v134
    %v344 = vunpack.c.h.b16 %v134
    %v345 = vunpack.c.l.b16 %v135
    %v346 = vunpack.c.h.b16 %v135
    %v347 = vunpack.c.l.b16 %v136
    %v348 = vunpack.c.h.b16 %v136
    %v349 = vunpack.c.l.b16 %v137
    %v350 = vunpack.c.h.b16 %v137
    %v351 = vunpack.c.l.b16 %v138
    %v352 = vunpack.c.h.b16 %v138
    %v353 = vunpack.c.l.b16 %v139
    %v354 = vunpack.c.h.b16 %v139
    %v355 = vunpack.c.l.b16 %v140
    %v356 = vunpack.c.h.b16 %v140
    %v357 = vunpack.c.l.b16 %v141
    %v358 = vunpack.c.h.b16 %v141
    %v359 = vunpack.c.l.b16 %v142
    %v360 = vunpack.c.h.b16 %v142
    %v361 = vunpack.c.l.b16 %v143
    %v362 = vunpack.c.h.b16 %v143
    %v363 = vunpack.c.l.b16 %v144
    %v364 = vunpack.c.h.b16 %v144
    %v365 = vunpack.c.l.b16 %v145
    %v366 = vunpack.c.h.b16 %v145
    %v367 = vunpack.c.l.b16 %v146
    %v368 = vunpack.c.h.b16 %v146
    %v369 = vunpack.c.l.b16 %v147
    %v370 = vunpack.c.h.b16 %v147
    %v371 = vunpack.c.l.b16 %v148
    %v372 = vunpack.c.h.b16 %v148
    %v373 = vunpack.c.l.b16 %v149
    %v374 = vunpack.c.h.b16 %v149
    %v375 = vunpack.c.l.b16 %v150
    %v376 = vunpack.c.h.b16 %v150
    %v377 = vunpack.c.l.b16 %v151
    %v378 = vunpack.c.h.b16 %v151
    %v379 = vunpack.c.l.b16 %v152
    %v380 = vunpack.c.h.b16 %v152
    %v381 = vunpack.c.l.b16 %v153
    %v382 = vunpack.c.h.b16 %v153
    %v383 = vunpack.c.l.b16 %v154
    %v384 = vunpack.c.h.b16 %v154
    %v385 = vunpack.c.l.b16 %v155
    %v386 = vunpack.c.h.b16 %v155
    %v387 = vunpack.c.l.b16 %v156
    %v388 = vunpack.c.h.b16 %v156
    %v389 = vunpack.c.l.b16 %v157
    %v390 = vunpack.c.h.b16 %v157
    %v391 = vunpack.c.l.b16 %v158
    %v392 = vunpack.c.h.b16 %v158
    %v393 = vunpack.c.l.b16 %v159
    %v394 = vunpack.c.h.b16 %v159
    %v395 = vunpack.c.l.b16 %v160
    %v396 = vunpack.c.h.b16 %v160
    %v397 = vunpack.c.l.b16 %v161
    %v398 = vunpack.c.h.b16 %v161
    %v399 = vunpack.c.l.b16 %v162
    %v400 = vunpack.c.h.b16 %v162
    %v401 = vunpack.c.l.b16 %v163
    %v402 = vunpack.c.h.b16 %v163
    %v403 = vunpack.c.l.b16 %v164
    %v404 = vunpack.c.h.b16 %v164
    %v405 = vunpack.c.l.b16 %v165
    %v406 = vunpack.c.h.b16 %v165
    %v407 = vunpack.c.l.b16 %v166
    %v408 = vunpack.c.h.b16 %v166
    %v409 = vunpack.c.l.b16 %v167
    %v410 = vunpack.c.h.b16 %v167
    %v411 = vunpack.c.l.b16 %v168
    %v412 = vunpack.c.h.b16 %v168
    %v413 = vunpack.c.l.b16 %v169
    %v414 = vunpack.c.h.b16 %v169
    %v415 = vunpack.c.l.b16 %v170
    %v416 = vunpack.c.h.b16 %v170
    %v417 = vunpack.c.l.b16 %v171
    %v418 = vunpack.c.h.b16 %v171
    %v419 = vunpack.c.l.b16 %v172
    %v420 = vunpack.c.h.b16 %v172
    %v421 = vunpack.c.l.b16 %v173
    %v422 = vunpack.c.h.b16 %v173
    %v423 = vunpack.c.l.b16 %v174
    %v424 = vunpack.c.h.b16 %v174
    %v425 = vunpack.c.l.b16 %v175
    %v426 = vunpack.c.h.b16 %v175
    %v427 = vunpack.c.l.b16 %v176
    %v428 = vunpack.c.h.b16 %v176
    %v429 = vunpack.c.l.b16 %v177
    %v430 = vunpack.c.h.b16 %v177
    %v431 = vunpack.c.l.b16 %v178
    %v432 = vunpack.c.h.b16 %v178
    %v433 = vunpack.c.l.b16 %v179
    %v434 = vunpack.c.h.b16 %v179
    %v435 = vunpack.c.l.b16 %v180
    %v436 = vunpack.c.h.b16 %v180
    %v437 = vunpack.c.l.b16 %v181
    %v438 = vunpack.c.h.b16 %v181
    %v439 = vunpack.c.l.b16 %v182
    %v440 = vunpack.c.h.b16 %v182
    %v441 = vunpack.c.l.b16 %v183
    %v442 = vunpack.c.h.b16 %v183
    %v443 = vunpack.c.l.b16 %v184
    %v444 = vunpack.c.h.b16 %v184
    %v445 = vunpack.c.l.b16 %v185
    %v446 = vunpack.c.h.b16 %v185
    %v447 = vunpack.c.l.b16 %v186
    %v448 = vunpack.c.h.b16 %v186
    %v449 = vunpack.c.l.b16 %v187
    %v450 = vunpack.c.h.b16 %v187
    %v451 = vunpack.c.l.b16 %v188
    %v452 = vunpack.c.h.b16 %v188
    %v453 = vunpack.c.l.b16 %v189
    %v454 = vunpack.c.h.b16 %v189
    %v455 = vunpack.c.l.b16 %v190
    %v456 = vunpack.c.h.b16 %v190
    %v457 = vpack.c.b16 %v337, %v329
    %v458 = vpack.c.b16 %v338, %v330
    %v459 = vpack.c.b16 %v339, %v331
    %v460 = vpack.c.b16 %v340, %v332
    %v461 = vpack.c.b16 %v341, %v333
    %v462 = vpack.c.b16 %v342, %v334
    %v463 = vpack.c.b16 %v343, %v335
    %v464 = vpack.c.b16 %v344, %v336
    %v465 = vpack.c.b16 %v353, %v345
    %v466 = vpack.c.b16 %v354, %v346
    %v467 = vpack.c.b16 %v355, %v347
    %v468 = vpack.c.b16 %v356, %v348
    %v469 = vpack.c.b16 %v357, %v349
    %v470 = vpack.c.b16 %v358, %v350
    %v471 = vpack.c.b16 %v359, %v351
    %v472 = vpack.c.b16 %v360, %v352
    %v473 = vpack.c.b16 %v369, %v361
    %v474 = vpack.c.b16 %v370, %v362
    %v475 = vpack.c.b16 %v371, %v363
    %v476 = vpack.c.b16 %v372, %v364
    %v477 = vpack.c.b16 %v373, %v365
    %v478 = vpack.c.b16 %v374, %v366
    %v479 = vpack.c.b16 %v375, %v367
    %v480 = vpack.c.b16 %v376, %v368
    %v481 = vpack.c.b16 %v385, %v377
    %v482 = vpack.c.b16 %v386, %v378
    %v483 = vpack.c.b16 %v387, %v379
    %v484 = vpack.c.b16 %v388, %v380
    %v485 = vpack.c.b16 %v389, %v381
    %v486 = vpack.c.b16 %v390, %v382
    %v487 = vpack.c.b16 %v391, %v383
    %v488 = vpack.c.b16 %v392, %v384
    %v489 = vpack.c.b16 %v401, %v393
    %v490 = vpack.c.b16 %v402, %v394
    %v491 = vpack.c.b16 %v403, %v395
    %v492 = vpack.c.b16 %v404, %v396
    %v493 = vpack.c.b16 %v405, %v397
    %v494 = vpack.c.b16 %v406, %v398
    %v495 = vpack.c.b16 %v407, %v399
    %v496 = vpack.c.b16 %v408, %v400
    %v497 = vpack.c.b16 %v417, %v409
    %v498 = vpack.c.b16 %v418, %v410
    %v499 = vpack.c.b16 %v419, %v411
    %v500 = vpack.c.b16 %v420, %v412
    %v501 = vpack.c.b16 %v421, %v413
    %v502 = vpack.c.b16 %v422, %v414
    %v503 = vpack.c.b16 %v423, %v415
    %v504 = vpack.c.b16 %v424, %v416
    %v505 = vpack.c.b16 %v433, %v425
    %v506 = vpack.c.b16 %v434, %v426
    %v507 = vpack.c.b16 %v435, %v427
    %v508 = vpack.c.b16 %v436, %v428
    %v509 = vpack.c.b16 %v437, %v429
    %v510 = vpack.c.b16 %v438, %v430
    %v511 = vpack.c.b16 %v439, %v431
    %v512 = vpack.c.b16 %v440, %v432
    %v513 = vpack.c.b16 %v449, %v441
    %v514 = vpack.c.b16 %v450, %v442
    %v515 = vpack.c.b16 %v451, %v443
    %v516 = vpack.c.b16 %v452, %v444
    %v517 = vpack.c.b16 %v453, %v445
    %v518 = vpack.c.b16 %v454, %v446
    %v519 = vpack.c.b16 %v455, %v447
    %v520 = vpack.c.b16 %v456, %v448
    %585 = vmatprep.subr.bf16.mxu0 %v458
    %586 = vmatpush1.bf16.msra.mxu0 %v457
    %587 = vmatprep.subr.bf16.mxu0 %v466
    %588 = vmatpush1.bf16.msra.mxu0 %v465
    %589 = vmatprep.subr.bf16.mxu0 %v474
    %590 = vmatpush1.bf16.msra.mxu0 %v473
    %591 = vmatprep.subr.bf16.mxu0 %v482
    %592 = vmatpush1.bf16.msra.mxu0 %v481
    %593 = vmatprep.subr.bf16.mxu0 %v490
    %594 = vmatpush1.bf16.msra.mxu0 %v489
    %595 = vmatprep.subr.bf16.mxu0 %v498
    %596 = vmatpush1.bf16.msra.mxu0 %v497
    %597 = vmatprep.subr.bf16.mxu0 %v506
    %598 = vmatpush1.bf16.msra.mxu0 %v505
    %599 = vmatprep.subr.bf16.mxu0 %v514
    %600 = vmatpush1.bf16.msra.mxu0 %v513
    %601 = vmatprep.subr.bf16.mxu0 0
    %602 = vmatpush1.bf16.msra.mxu0 0
    %603 = vmatprep.subr.bf16.mxu0 0
    %604 = vmatpush1.bf16.msra.mxu0 0
    %605 = vmatprep.subr.bf16.mxu0 0
    %606 = vmatpush1.bf16.msra.mxu0 0
    %607 = vmatprep.subr.bf16.mxu0 0
    %608 = vmatpush1.bf16.msra.mxu0 0
    %609 = vmatprep.subr.bf16.mxu0 0
    %610 = vmatpush1.bf16.msra.mxu0 0
    %611 = vmatprep.subr.bf16.mxu0 0
    %612 = vmatpush1.bf16.msra.mxu0 0
    %613 = vmatprep.subr.bf16.mxu0 0
    %614 = vmatpush1.bf16.msra.mxu0 0
    %615 = vmatprep.subr.bf16.mxu0 0
    %616 = vmatpush1.bf16.msra.mxu0 0
    %617 = vmatprep.mubr.bf16.mxu0 0
    %618 = vmatmul.mubr.bf16.gmra.mrb[0].mxu0 %v263
    %v619 = vpop.f32.mrb[0].mxu0
    %v620 = vadd.f32 %v196, %v619
    %v621 = vpop.f32.mrb[0].mxu0
    %v622 = vadd.f32 %v200, %v621
    %v623 = vpop.f32.mrb[0].mxu0
    %v624 = vpop.f32.mrb[0].mxu0
    %625 = vdwg.mxu0
    %626 = vmatprep.subr.bf16.mxu0 %v460
    %627 = vmatpush1.bf16.msra.mxu0 %v459
    %628 = vmatprep.subr.bf16.mxu0 %v468
    %629 = vmatpush1.bf16.msra.mxu0 %v467
    %630 = vmatprep.subr.bf16.mxu0 %v476
    %631 = vmatpush1.bf16.msra.mxu0 %v475
    %632 = vmatprep.subr.bf16.mxu0 %v484
    %633 = vmatpush1.bf16.msra.mxu0 %v483
    %634 = vmatprep.subr.bf16.mxu0 %v492
    %635 = vmatpush1.bf16.msra.mxu0 %v491
    %636 = vmatprep.subr.bf16.mxu0 %v500
    %637 = vmatpush1.bf16.msra.mxu0 %v499
    %638 = vmatprep.subr.bf16.mxu0 %v508
    %639 = vmatpush1.bf16.msra.mxu0 %v507
    %640 = vmatprep.subr.bf16.mxu0 %v516
    %641 = vmatpush1.bf16.msra.mxu0 %v515
    %642 = vmatprep.subr.bf16.mxu0 0
    %643 = vmatpush1.bf16.msra.mxu0 0
    %644 = vmatprep.subr.bf16.mxu0 0
    %645 = vmatpush1.bf16.msra.mxu0 0
    %646 = vmatprep.subr.bf16.mxu0 0
    %647 = vmatpush1.bf16.msra.mxu0 0
    %648 = vmatprep.subr.bf16.mxu0 0
    %649 = vmatpush1.bf16.msra.mxu0 0
    %650 = vmatprep.subr.bf16.mxu0 0
    %651 = vmatpush1.bf16.msra.mxu0 0
    %652 = vmatprep.subr.bf16.mxu0 0
    %653 = vmatpush1.bf16.msra.mxu0 0
    %654 = vmatprep.subr.bf16.mxu0 0
    %655 = vmatpush1.bf16.msra.mxu0 0
    %656 = vmatprep.subr.bf16.mxu0 0
    %657 = vmatpush1.bf16.msra.mxu0 0
    %658 = vmatprep.mubr.bf16.mxu0 0
    %659 = vmatmul.mubr.bf16.gmra.mrb[0].mxu0 %v263
    %v660 = vpop.f32.mrb[0].mxu0
    %v661 = vadd.f32 %v204, %v660
    %v662 = vpop.f32.mrb[0].mxu0
    %v663 = vadd.f32 %v208, %v662
    %v664 = vpop.f32.mrb[0].mxu0
    %v665 = vpop.f32.mrb[0].mxu0
    %666 = vdwg.mxu0
    %667 = vmatprep.subr.bf16.mxu0 %v462
    %668 = vmatpush1.bf16.msra.mxu0 %v461
    %669 = vmatprep.subr.bf16.mxu0 %v470
    %670 = vmatpush1.bf16.msra.mxu0 %v469
    %671 = vmatprep.subr.bf16.mxu0 %v478
    %672 = vmatpush1.bf16.msra.mxu0 %v477
    %673 = vmatprep.subr.bf16.mxu0 %v486
    %674 = vmatpush1.bf16.msra.mxu0 %v485
    %675 = vmatprep.subr.bf16.mxu0 %v494
    %676 = vmatpush1.bf16.msra.mxu0 %v493
    %677 = vmatprep.subr.bf16.mxu0 %v502
    %678 = vmatpush1.bf16.msra.mxu0 %v501
    %679 = vmatprep.subr.bf16.mxu0 %v510
    %680 = vmatpush1.bf16.msra.mxu0 %v509
    %681 = vmatprep.subr.bf16.mxu0 %v518
    %682 = vmatpush1.bf16.msra.mxu0 %v517
    %683 = vmatprep.subr.bf16.mxu0 0
    %684 = vmatpush1.bf16.msra.mxu0 0
    %685 = vmatprep.subr.bf16.mxu0 0
    %686 = vmatpush1.bf16.msra.mxu0 0
    %687 = vmatprep.subr.bf16.mxu0 0
    %688 = vmatpush1.bf16.msra.mxu0 0
    %689 = vmatprep.subr.bf16.mxu0 0
    %690 = vmatpush1.bf16.msra.mxu0 0
    %691 = vmatprep.subr.bf16.mxu0 0
    %692 = vmatpush1.bf16.msra.mxu0 0
    %693 = vmatprep.subr.bf16.mxu0 0
    %694 = vmatpush1.bf16.msra.mxu0 0
    %695 = vmatprep.subr.bf16.mxu0 0
    %696 = vmatpush1.bf16.msra.mxu0 0
    %697 = vmatprep.subr.bf16.mxu0 0
    %698 = vmatpush1.bf16.msra.mxu0 0
    %699 = vmatprep.mubr.bf16.mxu0 0
    %700 = vmatmul.mubr.bf16.gmra.mrb[0].mxu0 %v263
    %v701 = vpop.f32.mrb[0].mxu0
    %v702 = vadd.f32 %v212, %v701
    %v703 = vpop.f32.mrb[0].mxu0
    %v704 = vadd.f32 %v216, %v703
    %v705 = vpop.f32.mrb[0].mxu0
    %v706 = vpop.f32.mrb[0].mxu0
    %707 = vdwg.mxu0
    %708 = vmatprep.subr.bf16.mxu0 %v464
    %709 = vmatpush1.bf16.msra.mxu0 %v463
    %710 = vmatprep.subr.bf16.mxu0 %v472
    %711 = vmatpush1.bf16.msra.mxu0 %v471
    %712 = vmatprep.subr.bf16.mxu0 %v480
    %713 = vmatpush1.bf16.msra.mxu0 %v479
    %714 = vmatprep.subr.bf16.mxu0 %v488
    %715 = vmatpush1.bf16.msra.mxu0 %v487
    %716 = vmatprep.subr.bf16.mxu0 %v496
    %717 = vmatpush1.bf16.msra.mxu0 %v495
    %718 = vmatprep.subr.bf16.mxu0 %v504
    %719 = vmatpush1.bf16.msra.mxu0 %v503
    %720 = vmatprep.subr.bf16.mxu0 %v512
    %721 = vmatpush1.bf16.msra.mxu0 %v511
    %722 = vmatprep.subr.bf16.mxu0 %v520
    %723 = vmatpush1.bf16.msra.mxu0 %v519
    %724 = vmatprep.subr.bf16.mxu0 0
    %725 = vmatpush1.bf16.msra.mxu0 0
    %726 = vmatprep.subr.bf16.mxu0 0
    %727 = vmatpush1.bf16.msra.mxu0 0
    %728 = vmatprep.subr.bf16.mxu0 0
    %729 = vmatpush1.bf16.msra.mxu0 0
    %730 = vmatprep.subr.bf16.mxu0 0
    %731 = vmatpush1.bf16.msra.mxu0 0
    %732 = vmatprep.subr.bf16.mxu0 0
    %733 = vmatpush1.bf16.msra.mxu0 0
    %734 = vmatprep.subr.bf16.mxu0 0
    %735 = vmatpush1.bf16.msra.mxu0 0
    %736 = vmatprep.subr.bf16.mxu0 0
    %737 = vmatpush1.bf16.msra.mxu0 0
    %738 = vmatprep.subr.bf16.mxu0 0
    %739 = vmatpush1.bf16.msra.mxu0 0
    %740 = vmatprep.mubr.bf16.mxu0 0
    %741 = vmatmul.mubr.bf16.gmra.mrb[0].mxu0 %v263
    %v742 = vpop.f32.mrb[0].mxu0
    %v743 = vadd.f32 %v220, %v742
    %v744 = vpop.f32.mrb[0].mxu0
    %v745 = vadd.f32 %v224, %v744
    %v746 = vpop.f32.mrb[0].mxu0
    %v747 = vpop.f32.mrb[0].mxu0
    %748 = vdwg.mxu0
    %749 = vst [vmem:[#allocation8] sm:$0xff] %v620
    %750 = vst [vmem:[#allocation8 + $0x8] sm:$0xff] %v622
    %751 = vst [vmem:[#allocation8 + $0x10] sm:$0xff] %v661
    %752 = vst [vmem:[#allocation8 + $0x18] sm:$0xff] %v663
    %753 = vst [vmem:[#allocation8 + $0x20] sm:$0xff] %v702
    %754 = vst [vmem:[#allocation8 + $0x28] sm:$0xff] %v704
    %755 = vst [vmem:[#allocation8 + $0x30] sm:$0xff] %v743
    %756 = vst [vmem:[#allocation8 + $0x38] sm:$0xff] %v745
    // Predicated region
    $region26: #{tpu_custom_call.1} parent=1 // pred_check
      _
    $region27: #{tpu_custom_call.1} parent=1 // pred_check_branch
      %758 = sbr.rel (0) target = $region29
    $region28: #{tpu_custom_call.1} parent=1 // pred_region
      %s760 = ssub.s32 1024, 1024
      %761 = vsyncadd [#allocation4], %s760
      %s763 = sshll.u32 [#allocation8], 4
      %s764 = int_to_ptr.vmem [resolvable:$true] %s763
      %766 = dma.vmem_to_hbm [thread:$0]  %s764, 1024, %s3, [#allocation4]
    $region29: #{tpu_custom_call.1} parent=1 // pred_fallthru
      _
    // Predicated region
    $region30: #{tpu_custom_call.1} parent=1 // pred_check
      _
    $region31: #{tpu_custom_call.1} parent=1 // pred_check_branch
      %768 = sbr.rel (0) target = $region33
    $region32: #{tpu_custom_call.1} parent=1 // pred_region
      %769 = dma.done [#allocation4], 1024
    $region33: #{tpu_custom_call.1} parent=1 // pred_fallthru
      _
    %770 = vsyncpa [#allocation3], 1
    %771 = vsyncpa [#allocation6], 1
    %772 = vsyncpa [#allocation4], 1

// kernel: tpu_custom_call.1
$region0: #{tpu_custom_call.1}
  #allocation0 [shape = 'u32[]', space=smem, size = 0x4, offset = 0x4, fixed_abs, tag = 'smem constant byte address 0x4 - core index']
  #allocation1 [shape = 'u32[144,128]{1,0:T(1,128)}', space=vmem, size = 0x12000, scoped, tag = 'internal scratch']
  %s0 = inlined_call_operand.hbm [shape: bf16[8,8,128], index: 0, kind: input, shape index: {}]
  %s1 = inlined_call_operand.hbm [shape: bf16[128,1024], index: 1, kind: input, shape index: {}]
  %s2 = inlined_call_operand.hbm [shape: f32[1,1024], index: 2, kind: input, shape index: {}]
  %s3 = inlined_call_operand.hbm [shape: f32[8,1024], index: 3, kind: output, shape index: {}]
  %s4 = sld [smem:[#allocation0]]
  $region34: #{tpu_custom_call.1} parent=0
    _
  %s6 = ssub.s32 1, %s4
  %s7 = scalar_select 0, %s6, %s4
  $region1: #{tpu_custom_call.1} parent=0
    #allocation2 [shape = 'u8[16384]{0}', space=vmem, size = 0x4000, scoped, tag = 'input window, operand 0, single buffered']
    #allocation3 [shape = 's32[1]{0}', space=sflag, size = 0x4, scoped, tag = 'scoped memory for tpu_custom_call.1']
    #allocation4 [shape = 's32[1]{0}', space=sflag, size = 0x4, scoped, tag = 'scoped memory for tpu_custom_call.1']
    #allocation5 [shape = 'u8[262144]{0}', space=vmem, size = 0x40000, scoped, tag = 'input window, operand 1, single buffered']
    #allocation6 [shape = 's32[1]{0}', space=sflag, size = 0x4, scoped, tag = 'scoped memory for tpu_custom_call.1']
    #allocation7 [shape = 'u8[4096]{0}', space=vmem, size = 0x1000, scoped, tag = 'input window, operand 2, single buffered']
    #allocation8 [shape = 'u8[32768]{0}', space=vmem, size = 0x8000, scoped, tag = 'output window, operand 0, single buffered']
    %8 = vsyncpa [#allocation3], 0
    %9 = vsyncpa [#allocation6], 0
    %10 = vsyncpa [#allocation4], 0
    // Predicated region
    $region2: #{tpu_custom_call.1} parent=1 // pred_check
      _
    $region3: #{tpu_custom_call.1} parent=1 // pred_check_branch
      %12 = sbr.rel (0) target = $region5
    $region4: #{tpu_custom_call.1} parent=1 // pred_region
      %s14 = ssub.s32 512, 512
      %15 = vsyncadd [#allocation3], %s14
      %s16 = sshll.u32 [#allocation2], 4
      %s17 = int_to_ptr.vmem [resolvable:$true] %s16
      %22 = dma.hbm_to_vmem [thread:$0]  %s0, 512, %s17, [#allocation3], 64, 64, 4
    $region5: #{tpu_custom_call.1} parent=1 // pred_fallthru
      _
    // Predicated region
    $region6: #{tpu_custom_call.1} parent=1 // pred_check
      _
    $region7: #{tpu_custom_call.1} parent=1 // pred_check_branch
      %24 = sbr.rel (0) target = $region9
    $region8: #{tpu_custom_call.1} parent=1 // pred_region
      %s26 = ssub.s32 8192, 8192
      %27 = vsyncadd [#allocation6], %s26
      %s28 = sshll.u32 [#allocation5], 4
      %s29 = int_to_ptr.vmem [resolvable:$true] %s28
      %34 = dma.hbm_to_vmem [thread:$0]  %s1, 8192, %s29, [#allocation6], 512, 512, 32
    $region9: #{tpu_custom_call.1} parent=1 // pred_fallthru
      _
    // Predicated region
    $region10: #{tpu_custom_call.1} parent=1 // pred_check
      _
    $region11: #{tpu_custom_call.1} parent=1 // pred_check_branch
      %36 = sbr.rel (0) target = $region13
    $region12: #{tpu_custom_call.1} parent=1 // pred_region
      %s38 = ssub.s32 128, 128
      %39 = vsyncadd [#allocation6], %s38
      %s41 = sshll.u32 [#allocation7], 4
      %s42 = int_to_ptr.vmem [resolvable:$true] %s41
      %44 = dma.hbm_to_vmem [thread:$0]  %s2, 128, %s42, [#allocation6]
    $region13: #{tpu_custom_call.1} parent=1 // pred_fallthru
      _
    // Predicated region
    $region14: #{tpu_custom_call.1} parent=1 // pred_check
      _
    $region15: #{tpu_custom_call.1} parent=1 // pred_check_branch
      %46 = sbr.rel (0) target = $region17
    $region16: #{tpu_custom_call.1} parent=1 // pred_region
      %47 = dma.done [#allocation3], 512
    $region17: #{tpu_custom_call.1} parent=1 // pred_fallthru
      _
    // Predicated region
    $region18: #{tpu_custom_call.1} parent=1 // pred_check
      _
    $region19: #{tpu_custom_call.1} parent=1 // pred_check_branch
      %49 = sbr.rel (0) target = $region21
    $region20: #{tpu_custom_call.1} parent=1 // pred_region
      %50 = dma.done [#allocation6], 8192
    $region21: #{tpu_custom_call.1} parent=1 // pred_fallthru
      _
    // Predicated region
    $region22: #{tpu_custom_call.1} parent=1 // pred_check
      _
    $region23: #{tpu_custom_call.1} parent=1 // pred_check_branch
      %52 = sbr.rel (0) target = $region25
    $region24: #{tpu_custom_call.1} parent=1 // pred_region
      %53 = dma.done [#allocation6], 128
    $region25: #{tpu_custom_call.1} parent=1 // pred_fallthru
      _
    %v55 = vld [vmem:[#allocation2] sm:$0xf]
    %v56 = vld [vmem:[#allocation2 + $0x4] sm:$0xf]
    %v57 = vld [vmem:[#allocation2 + $0x8] sm:$0xf]
    %v58 = vld [vmem:[#allocation2 + $0xc] sm:$0xf]
    %v59 = vld [vmem:[#allocation2 + $0x10] sm:$0xf]
    %v60 = vld [vmem:[#allocation2 + $0x14] sm:$0xf]
    %v61 = vld [vmem:[#allocation2 + $0x18] sm:$0xf]
    %v62 = vld [vmem:[#allocation2 + $0x1c] sm:$0xf]
    %v63 = vunpack.c.l.bf16 %v55
    %v64 = vunpack.c.l.bf16 %v56
    %v65 = vunpack.c.l.bf16 %v57
    %v66 = vunpack.c.l.bf16 %v58
    %v67 = vunpack.c.l.bf16 %v59
    %v68 = vunpack.c.l.bf16 %v60
    %v69 = vunpack.c.l.bf16 %v61
    %v70 = vunpack.c.l.bf16 %v62
    %v71 = vrot.slane %v63, 4
    %v72 = vadd.f32 %v63, %v71
    %v73 = vrot.slane %v72, 2
    %v74 = vadd.f32 %v72, %v73
    %v75 = vrot.slane %v74, 1
    %v76 = vadd.f32 %v74, %v75
    %v77 = vrot.slane %v64, 4
    %v78 = vadd.f32 %v64, %v77
    %v79 = vrot.slane %v78, 2
    %v80 = vadd.f32 %v78, %v79
    %v81 = vrot.slane %v80, 1
    %v82 = vadd.f32 %v80, %v81
    %v83 = vrot.slane %v65, 4
    %v84 = vadd.f32 %v65, %v83
    %v85 = vrot.slane %v84, 2
    %v86 = vadd.f32 %v84, %v85
    %v87 = vrot.slane %v86, 1
    %v88 = vadd.f32 %v86, %v87
    %v89 = vrot.slane %v66, 4
    %v90 = vadd.f32 %v66, %v89
    %v91 = vrot.slane %v90, 2
    %v92 = vadd.f32 %v90, %v91
    %v93 = vrot.slane %v92, 1
    %v94 = vadd.f32 %v92, %v93
    %v95 = vrot.slane %v67, 4
    %v96 = vadd.f32 %v67, %v95
    %v97 = vrot.slane %v96, 2
    %v98 = vadd.f32 %v96, %v97
    %v99 = vrot.slane %v98, 1
    %v100 = vadd.f32 %v98, %v99
    %v101 = vrot.slane %v68, 4
    %v102 = vadd.f32 %v68, %v101
    %v103 = vrot.slane %v102, 2
    %v104 = vadd.f32 %v102, %v103
    %v105 = vrot.slane %v104, 1
    %v106 = vadd.f32 %v104, %v105
    %v107 = vrot.slane %v69, 4
    %v108 = vadd.f32 %v69, %v107
    %v109 = vrot.slane %v108, 2
    %v110 = vadd.f32 %v108, %v109
    %v111 = vrot.slane %v110, 1
    %v112 = vadd.f32 %v110, %v111
    %v113 = vrot.slane %v70, 4
    %v114 = vadd.f32 %v70, %v113
    %v115 = vrot.slane %v114, 2
    %v116 = vadd.f32 %v114, %v115
    %v117 = vrot.slane %v116, 1
    %v118 = vadd.f32 %v116, %v117
    %v119 = vpack.c.bf16 %v76, %v76
    %v120 = vpack.c.bf16 %v82, %v82
    %v121 = vpack.c.bf16 %v88, %v88
    %v122 = vpack.c.bf16 %v94, %v94
    %v123 = vpack.c.bf16 %v100, %v100
    %v124 = vpack.c.bf16 %v106, %v106
    %v125 = vpack.c.bf16 %v112, %v112
    %v126 = vpack.c.bf16 %v118, %v118
    %v127 = vld [vmem:[#allocation5] sm:$0xff]
    %v128 = vld [vmem:[#allocation5 + $0x8] sm:$0xff]
    %v129 = vld [vmem:[#allocation5 + $0x10] sm:$0xff]
    %v130 = vld [vmem:[#allocation5 + $0x18] sm:$0xff]
    %v131 = vld [vmem:[#allocation5 + $0x20] sm:$0xff]
    %v132 = vld [vmem:[#allocation5 + $0x28] sm:$0xff]
    %v133 = vld [vmem:[#allocation5 + $0x30] sm:$0xff]
    %v134 = vld [vmem:[#allocation5 + $0x38] sm:$0xff]
    %v135 = vld [vmem:[#allocation5 + $0x40] sm:$0xff]
    %v136 = vld [vmem:[#allocation5 + $0x48] sm:$0xff]
    %v137 = vld [vmem:[#allocation5 + $0x50] sm:$0xff]
    %v138 = vld [vmem:[#allocation5 + $0x58] sm:$0xff]
    %v139 = vld [vmem:[#allocation5 + $0x60] sm:$0xff]
    %v140 = vld [vmem:[#allocation5 + $0x68] sm:$0xff]
    %v141 = vld [vmem:[#allocation5 + $0x70] sm:$0xff]
    %v142 = vld [vmem:[#allocation5 + $0x78] sm:$0xff]
    %v143 = vld [vmem:[#allocation5 + $0x80] sm:$0xff]
    %v144 = vld [vmem:[#allocation5 + $0x88] sm:$0xff]
    %v145 = vld [vmem:[#allocation5 + $0x90] sm:$0xff]
    %v146 = vld [vmem:[#allocation5 + $0x98] sm:$0xff]
    %v147 = vld [vmem:[#allocation5 + $0xa0] sm:$0xff]
    %v148 = vld [vmem:[#allocation5 + $0xa8] sm:$0xff]
    %v149 = vld [vmem:[#allocation5 + $0xb0] sm:$0xff]
    %v150 = vld [vmem:[#allocation5 + $0xb8] sm:$0xff]
    %v151 = vld [vmem:[#allocation5 + $0xc0] sm:$0xff]
    %v152 = vld [vmem:[#allocation5 + $0xc8] sm:$0xff]
    %v153 = vld [vmem:[#allocation5 + $0xd0] sm:$0xff]
    %v154 = vld [vmem:[#allocation5 + $0xd8] sm:$0xff]
    %v155 = vld [vmem:[#allocation5 + $0xe0] sm:$0xff]
    %v156 = vld [vmem:[#allocation5 + $0xe8] sm:$0xff]
    %v157 = vld [vmem:[#allocation5 + $0xf0] sm:$0xff]
    %v158 = vld [vmem:[#allocation5 + $0xf8] sm:$0xff]
    %v159 = vld [vmem:[#allocation5 + $0x100] sm:$0xff]
    %v160 = vld [vmem:[#allocation5 + $0x108] sm:$0xff]
    %v161 = vld [vmem:[#allocation5 + $0x110] sm:$0xff]
    %v162 = vld [vmem:[#allocation5 + $0x118] sm:$0xff]
    %v163 = vld [vmem:[#allocation5 + $0x120] sm:$0xff]
    %v164 = vld [vmem:[#allocation5 + $0x128] sm:$0xff]
    %v165 = vld [vmem:[#allocation5 + $0x130] sm:$0xff]
    %v166 = vld [vmem:[#allocation5 + $0x138] sm:$0xff]
    %v167 = vld [vmem:[#allocation5 + $0x140] sm:$0xff]
    %v168 = vld [vmem:[#allocation5 + $0x148] sm:$0xff]
    %v169 = vld [vmem:[#allocation5 + $0x150] sm:$0xff]
    %v170 = vld [vmem:[#allocation5 + $0x158] sm:$0xff]
    %v171 = vld [vmem:[#allocation5 + $0x160] sm:$0xff]
    %v172 = vld [vmem:[#allocation5 + $0x168] sm:$0xff]
    %v173 = vld [vmem:[#allocation5 + $0x170] sm:$0xff]
    %v174 = vld [vmem:[#allocation5 + $0x178] sm:$0xff]
    %v175 = vld [vmem:[#allocation5 + $0x180] sm:$0xff]
    %v176 = vld [vmem:[#allocation5 + $0x188] sm:$0xff]
    %v177 = vld [vmem:[#allocation5 + $0x190] sm:$0xff]
    %v178 = vld [vmem:[#allocation5 + $0x198] sm:$0xff]
    %v179 = vld [vmem:[#allocation5 + $0x1a0] sm:$0xff]
    %v180 = vld [vmem:[#allocation5 + $0x1a8] sm:$0xff]
    %v181 = vld [vmem:[#allocation5 + $0x1b0] sm:$0xff]
    %v182 = vld [vmem:[#allocation5 + $0x1b8] sm:$0xff]
    %v183 = vld [vmem:[#allocation5 + $0x1c0] sm:$0xff]
    %v184 = vld [vmem:[#allocation5 + $0x1c8] sm:$0xff]
    %v185 = vld [vmem:[#allocation5 + $0x1d0] sm:$0xff]
    %v186 = vld [vmem:[#allocation5 + $0x1d8] sm:$0xff]
    %v187 = vld [vmem:[#allocation5 + $0x1e0] sm:$0xff]
    %v188 = vld [vmem:[#allocation5 + $0x1e8] sm:$0xff]
    %v189 = vld [vmem:[#allocation5 + $0x1f0] sm:$0xff]
    %v190 = vld [vmem:[#allocation5 + $0x1f8] sm:$0xff]
    %v191 = vld [vmem:[#allocation7] sm:$0xff]
    %v193 = vlaneseq
    %v194 = vshrl.u32 %v193, 7
    %v195 = vsub.s32 0, %v194
    %v196 = vrot.slane %v191, %v195
    %v197 = vlaneseq
    %v198 = vshrl.u32 %v197, 7
    %v199 = vsub.s32 1, %v198
    %v200 = vrot.slane %v191, %v199
    %v201 = vlaneseq
    %v202 = vshrl.u32 %v201, 7
    %v203 = vsub.s32 2, %v202
    %v204 = vrot.slane %v191, %v203
    %v205 = vlaneseq
    %v206 = vshrl.u32 %v205, 7
    %v207 = vsub.s32 3, %v206
    %v208 = vrot.slane %v191, %v207
    %v209 = vlaneseq
    %v210 = vshrl.u32 %v209, 7
    %v211 = vsub.s32 4, %v210
    %v212 = vrot.slane %v191, %v211
    %v213 = vlaneseq
    %v214 = vshrl.u32 %v213, 7
    %v215 = vsub.s32 5, %v214
    %v216 = vrot.slane %v191, %v215
    %v217 = vlaneseq
    %v218 = vshrl.u32 %v217, 7
    %v219 = vsub.s32 6, %v218
    %v220 = vrot.slane %v191, %v219
    %v221 = vlaneseq
    %v222 = vshrl.u32 %v221, 7
    %v223 = vsub.s32 7, %v222
    %v224 = vrot.slane %v191, %v223
    %v241 = vunpack.c.l.b16 %v119
    %v242 = vunpack.c.l.b16 %v120
    %v243 = vunpack.c.l.b16 %v121
    %v244 = vunpack.c.l.b16 %v122
    %v245 = vunpack.c.l.b16 %v123
    %v246 = vunpack.c.l.b16 %v124
    %v247 = vunpack.c.l.b16 %v125
    %v248 = vunpack.c.l.b16 %v126
    %vm249 = vcmask 1041409
    %v250 = vsel %vm249, %v242, %v241
    %vm251 = vcmask 1042434
    %v252 = vsel %vm251, %v243, %v250
    %vm253 = vcmask 1043459
    %v254 = vsel %vm253, %v244, %v252
    %vm255 = vcmask 1044484
    %v256 = vsel %vm255, %v245, %v254
    %vm257 = vcmask 1045509
    %v258 = vsel %vm257, %v246, %v256
    %vm259 = vcmask 1046534
    %v260 = vsel %vm259, %v247, %v258
    %vm261 = vcmask 1047559
    %v262 = vsel %vm261, %v248, %v260
    %v263 = vpack.c.b16 %v262, %v262
    %v329 = vunpack.c.l.b16 %v127
    %v330 = vunpack.c.h.b16 %v127
    %v331 = vunpack.c.l.b16 %v128
    %v332 = vunpack.c.h.b16 %v128
    %v333 = vunpack.c.l.b16 %v129
    %v334 = vunpack.c.h.b16 %v129
    %v335 = vunpack.c.l.b16 %v130
    %v336 = vunpack.c.h.b16 %v130
    %v337 = vunpack.c.l.b16 %v131
    %v338 = vunpack.c.h.b16 %v131
    %v339 = vunpack.c.l.b16 %v132
    %v340 = vunpack.c.h.b16 %v132
    %v341 = vunpack.c.l.b16 %v133
    %v342 = vunpack.c.h.b16 %v133
    %v343 = vunpack.c.l.b16 %v134
    %v344 = vunpack.c.h.b16 %v134
    %v345 = vunpack.c.l.b16 %v135
    %v346 = vunpack.c.h.b16 %v135
    %v347 = vunpack.c.l.b16 %v136
    %v348 = vunpack.c.h.b16 %v136
    %v349 = vunpack.c.l.b16 %v137
    %v350 = vunpack.c.h.b16 %v137
    %v351 = vunpack.c.l.b16 %v138
    %v352 = vunpack.c.h.b16 %v138
    %v353 = vunpack.c.l.b16 %v139
    %v354 = vunpack.c.h.b16 %v139
    %v355 = vunpack.c.l.b16 %v140
    %v356 = vunpack.c.h.b16 %v140
    %v357 = vunpack.c.l.b16 %v141
    %v358 = vunpack.c.h.b16 %v141
    %v359 = vunpack.c.l.b16 %v142
    %v360 = vunpack.c.h.b16 %v142
    %v361 = vunpack.c.l.b16 %v143
    %v362 = vunpack.c.h.b16 %v143
    %v363 = vunpack.c.l.b16 %v144
    %v364 = vunpack.c.h.b16 %v144
    %v365 = vunpack.c.l.b16 %v145
    %v366 = vunpack.c.h.b16 %v145
    %v367 = vunpack.c.l.b16 %v146
    %v368 = vunpack.c.h.b16 %v146
    %v369 = vunpack.c.l.b16 %v147
    %v370 = vunpack.c.h.b16 %v147
    %v371 = vunpack.c.l.b16 %v148
    %v372 = vunpack.c.h.b16 %v148
    %v373 = vunpack.c.l.b16 %v149
    %v374 = vunpack.c.h.b16 %v149
    %v375 = vunpack.c.l.b16 %v150
    %v376 = vunpack.c.h.b16 %v150
    %v377 = vunpack.c.l.b16 %v151
    %v378 = vunpack.c.h.b16 %v151
    %v379 = vunpack.c.l.b16 %v152
    %v380 = vunpack.c.h.b16 %v152
    %v381 = vunpack.c.l.b16 %v153
    %v382 = vunpack.c.h.b16 %v153
    %v383 = vunpack.c.l.b16 %v154
    %v384 = vunpack.c.h.b16 %v154
    %v385 = vunpack.c.l.b16 %v155
    %v386 = vunpack.c.h.b16 %v155
    %v387 = vunpack.c.l.b16 %v156
    %v388 = vunpack.c.h.b16 %v156
    %v389 = vunpack.c.l.b16 %v157
    %v390 = vunpack.c.h.b16 %v157
    %v391 = vunpack.c.l.b16 %v158
    %v392 = vunpack.c.h.b16 %v158
    %v393 = vunpack.c.l.b16 %v159
    %v394 = vunpack.c.h.b16 %v159
    %v395 = vunpack.c.l.b16 %v160
    %v396 = vunpack.c.h.b16 %v160
    %v397 = vunpack.c.l.b16 %v161
    %v398 = vunpack.c.h.b16 %v161
    %v399 = vunpack.c.l.b16 %v162
    %v400 = vunpack.c.h.b16 %v162
    %v401 = vunpack.c.l.b16 %v163
    %v402 = vunpack.c.h.b16 %v163
    %v403 = vunpack.c.l.b16 %v164
    %v404 = vunpack.c.h.b16 %v164
    %v405 = vunpack.c.l.b16 %v165
    %v406 = vunpack.c.h.b16 %v165
    %v407 = vunpack.c.l.b16 %v166
    %v408 = vunpack.c.h.b16 %v166
    %v409 = vunpack.c.l.b16 %v167
    %v410 = vunpack.c.h.b16 %v167
    %v411 = vunpack.c.l.b16 %v168
    %v412 = vunpack.c.h.b16 %v168
    %v413 = vunpack.c.l.b16 %v169
    %v414 = vunpack.c.h.b16 %v169
    %v415 = vunpack.c.l.b16 %v170
    %v416 = vunpack.c.h.b16 %v170
    %v417 = vunpack.c.l.b16 %v171
    %v418 = vunpack.c.h.b16 %v171
    %v419 = vunpack.c.l.b16 %v172
    %v420 = vunpack.c.h.b16 %v172
    %v421 = vunpack.c.l.b16 %v173
    %v422 = vunpack.c.h.b16 %v173
    %v423 = vunpack.c.l.b16 %v174
    %v424 = vunpack.c.h.b16 %v174
    %v425 = vunpack.c.l.b16 %v175
    %v426 = vunpack.c.h.b16 %v175
    %v427 = vunpack.c.l.b16 %v176
    %v428 = vunpack.c.h.b16 %v176
    %v429 = vunpack.c.l.b16 %v177
    %v430 = vunpack.c.h.b16 %v177
    %v431 = vunpack.c.l.b16 %v178
    %v432 = vunpack.c.h.b16 %v178
    %v433 = vunpack.c.l.b16 %v179
    %v434 = vunpack.c.h.b16 %v179
    %v435 = vunpack.c.l.b16 %v180
    %v436 = vunpack.c.h.b16 %v180
    %v437 = vunpack.c.l.b16 %v181
    %v438 = vunpack.c.h.b16 %v181
    %v439 = vunpack.c.l.b16 %v182
    %v440 = vunpack.c.h.b16 %v182
    %v441 = vunpack.c.l.b16 %v183
    %v442 = vunpack.c.h.b16 %v183
    %v443 = vunpack.c.l.b16 %v184
    %v444 = vunpack.c.h.b16 %v184
    %v445 = vunpack.c.l.b16 %v185
    %v446 = vunpack.c.h.b16 %v185
    %v447 = vunpack.c.l.b16 %v186
    %v448 = vunpack.c.h.b16 %v186
    %v449 = vunpack.c.l.b16 %v187
    %v450 = vunpack.c.h.b16 %v187
    %v451 = vunpack.c.l.b16 %v188
    %v452 = vunpack.c.h.b16 %v188
    %v453 = vunpack.c.l.b16 %v189
    %v454 = vunpack.c.h.b16 %v189
    %v455 = vunpack.c.l.b16 %v190
    %v456 = vunpack.c.h.b16 %v190
    %v457 = vpack.c.b16 %v337, %v329
    %v458 = vpack.c.b16 %v338, %v330
    %v459 = vpack.c.b16 %v339, %v331
    %v460 = vpack.c.b16 %v340, %v332
    %v461 = vpack.c.b16 %v341, %v333
    %v462 = vpack.c.b16 %v342, %v334
    %v463 = vpack.c.b16 %v343, %v335
    %v464 = vpack.c.b16 %v344, %v336
    %v465 = vpack.c.b16 %v353, %v345
    %v466 = vpack.c.b16 %v354, %v346
    %v467 = vpack.c.b16 %v355, %v347
    %v468 = vpack.c.b16 %v356, %v348
    %v469 = vpack.c.b16 %v357, %v349
    %v470 = vpack.c.b16 %v358, %v350
    %v471 = vpack.c.b16 %v359, %v351
    %v472 = vpack.c.b16 %v360, %v352
    %v473 = vpack.c.b16 %v369, %v361
    %v474 = vpack.c.b16 %v370, %v362
    %v475 = vpack.c.b16 %v371, %v363
    %v476 = vpack.c.b16 %v372, %v364
    %v477 = vpack.c.b16 %v373, %v365
    %v478 = vpack.c.b16 %v374, %v366
    %v479 = vpack.c.b16 %v375, %v367
    %v480 = vpack.c.b16 %v376, %v368
    %v481 = vpack.c.b16 %v385, %v377
    %v482 = vpack.c.b16 %v386, %v378
    %v483 = vpack.c.b16 %v387, %v379
    %v484 = vpack.c.b16 %v388, %v380
    %v485 = vpack.c.b16 %v389, %v381
    %v486 = vpack.c.b16 %v390, %v382
    %v487 = vpack.c.b16 %v391, %v383
    %v488 = vpack.c.b16 %v392, %v384
    %v489 = vpack.c.b16 %v401, %v393
    %v490 = vpack.c.b16 %v402, %v394
    %v491 = vpack.c.b16 %v403, %v395
    %v492 = vpack.c.b16 %v404, %v396
    %v493 = vpack.c.b16 %v405, %v397
    %v494 = vpack.c.b16 %v406, %v398
    %v495 = vpack.c.b16 %v407, %v399
    %v496 = vpack.c.b16 %v408, %v400
    %v497 = vpack.c.b16 %v417, %v409
    %v498 = vpack.c.b16 %v418, %v410
    %v499 = vpack.c.b16 %v419, %v411
    %v500 = vpack.c.b16 %v420, %v412
    %v501 = vpack.c.b16 %v421, %v413
    %v502 = vpack.c.b16 %v422, %v414
    %v503 = vpack.c.b16 %v423, %v415
    %v504 = vpack.c.b16 %v424, %v416
    %v505 = vpack.c.b16 %v433, %v425
    %v506 = vpack.c.b16 %v434, %v426
    %v507 = vpack.c.b16 %v435, %v427
    %v508 = vpack.c.b16 %v436, %v428
    %v509 = vpack.c.b16 %v437, %v429
    %v510 = vpack.c.b16 %v438, %v430
    %v511 = vpack.c.b16 %v439, %v431
    %v512 = vpack.c.b16 %v440, %v432
    %v513 = vpack.c.b16 %v449, %v441
    %v514 = vpack.c.b16 %v450, %v442
    %v515 = vpack.c.b16 %v451, %v443
    %v516 = vpack.c.b16 %v452, %v444
    %v517 = vpack.c.b16 %v453, %v445
    %v518 = vpack.c.b16 %v454, %v446
    %v519 = vpack.c.b16 %v455, %v447
    %v520 = vpack.c.b16 %v456, %v448
    %585 = vmatprep.subr.bf16.mxu0 %v458
    %586 = vmatpush1.bf16.msra.mxu0 %v457
    %587 = vmatprep.subr.bf16.mxu0 %v466
    %588 = vmatpush1.bf16.msra.mxu0 %v465
    %589 = vmatprep.subr.bf16.mxu0 %v474
    %590 = vmatpush1.bf16.msra.mxu0 %v473
    %591 = vmatprep.subr.bf16.mxu0 %v482
    %592 = vmatpush1.bf16.msra.mxu0 %v481
    %593 = vmatprep.subr.bf16.mxu0 %v490
    %594 = vmatpush1.bf16.msra.mxu0 %v489
    %595 = vmatprep.subr.bf16.mxu0 %v498
    %596 = vmatpush1.bf16.msra.mxu0 %v497
    %597 = vmatprep.subr.bf16.mxu0 %v506
    %598 = vmatpush1.bf16.msra.mxu0 %v505
    %599 = vmatprep.subr.bf16.mxu0 %v514
    %600 = vmatpush1.bf16.msra.mxu0 %v513
    %601 = vmatprep.subr.bf16.mxu0 0
    %602 = vmatpush1.bf16.msra.mxu0 0
    %603 = vmatprep.subr.bf16.mxu0 0
    %604 = vmatpush1.bf16.msra.mxu0 0
    %605 = vmatprep.subr.bf16.mxu0 0
    %606 = vmatpush1.bf16.msra.mxu0 0
    %607 = vmatprep.subr.bf16.mxu0 0
    %608 = vmatpush1.bf16.msra.mxu0 0
    %609 = vmatprep.subr.bf16.mxu0 0
    %610 = vmatpush1.bf16.msra.mxu0 0
    %611 = vmatprep.subr.bf16.mxu0 0
    %612 = vmatpush1.bf16.msra.mxu0 0
    %613 = vmatprep.subr.bf16.mxu0 0
    %614 = vmatpush1.bf16.msra.mxu0 0
    %615 = vmatprep.subr.bf16.mxu0 0
    %616 = vmatpush1.bf16.msra.mxu0 0
    %617 = vmatprep.mubr.bf16.mxu0 0
    %618 = vmatmul.mubr.bf16.gmra.mrb[0].mxu0 %v263
    %v619 = vpop.f32.mrb[0].mxu0
    %v620 = vadd.f32 %v196, %v619
    %v621 = vpop.f32.mrb[0].mxu0
    %v622 = vadd.f32 %v200, %v621
    %v623 = vpop.f32.mrb[0].mxu0
    %v624 = vpop.f32.mrb[0].mxu0
    %625 = vdwg.mxu0
    %626 = vmatprep.subr.bf16.mxu0 %v460
    %627 = vmatpush1.bf16.msra.mxu0 %v459
    %628 = vmatprep.subr.bf16.mxu0 %v468
    %629 = vmatpush1.bf16.msra.mxu0 %v467
    %630 = vmatprep.subr.bf16.mxu0 %v476
    %631 = vmatpush1.bf16.msra.mxu0 %v475
    %632 = vmatprep.subr.bf16.mxu0 %v484
    %633 = vmatpush1.bf16.msra.mxu0 %v483
    %634 = vmatprep.subr.bf16.mxu0 %v492
    %635 = vmatpush1.bf16.msra.mxu0 %v491
    %636 = vmatprep.subr.bf16.mxu0 %v500
    %637 = vmatpush1.bf16.msra.mxu0 %v499
    %638 = vmatprep.subr.bf16.mxu0 %v508
    %639 = vmatpush1.bf16.msra.mxu0 %v507
    %640 = vmatprep.subr.bf16.mxu0 %v516
    %641 = vmatpush1.bf16.msra.mxu0 %v515
    %642 = vmatprep.subr.bf16.mxu0 0
    %643 = vmatpush1.bf16.msra.mxu0 0
    %644 = vmatprep.subr.bf16.mxu0 0
    %645 = vmatpush1.bf16.msra.mxu0 0
    %646 = vmatprep.subr.bf16.mxu0 0
    %647 = vmatpush1.bf16.msra.mxu0 0
    %648 = vmatprep.subr.bf16.mxu0 0
    %649 = vmatpush1.bf16.msra.mxu0 0
    %650 = vmatprep.subr.bf16.mxu0 0
    %651 = vmatpush1.bf16.msra.mxu0 0
    %652 = vmatprep.subr.bf16.mxu0 0
    %653 = vmatpush1.bf16.msra.mxu0 0
    %654 = vmatprep.subr.bf16.mxu0 0
    %655 = vmatpush1.bf16.msra.mxu0 0
    %656 = vmatprep.subr.bf16.mxu0 0
    %657 = vmatpush1.bf16.msra.mxu0 0
    %658 = vmatprep.mubr.bf16.mxu0 0
    %659 = vmatmul.mubr.bf16.gmra.mrb[0].mxu0 %v263
    %v660 = vpop.f32.mrb[0].mxu0
    %v661 = vadd.f32 %v204, %v660
    %v662 = vpop.f32.mrb[0].mxu0
    %v663 = vadd.f32 %v208, %v662
    %v664 = vpop.f32.mrb[0].mxu0
    %v665 = vpop.f32.mrb[0].mxu0
    %666 = vdwg.mxu0
    %667 = vmatprep.subr.bf16.mxu0 %v462
    %668 = vmatpush1.bf16.msra.mxu0 %v461
    %669 = vmatprep.subr.bf16.mxu0 %v470
    %670 = vmatpush1.bf16.msra.mxu0 %v469
    %671 = vmatprep.subr.bf16.mxu0 %v478
    %672 = vmatpush1.bf16.msra.mxu0 %v477
    %673 = vmatprep.subr.bf16.mxu0 %v486
    %674 = vmatpush1.bf16.msra.mxu0 %v485
    %675 = vmatprep.subr.bf16.mxu0 %v494
    %676 = vmatpush1.bf16.msra.mxu0 %v493
    %677 = vmatprep.subr.bf16.mxu0 %v502
    %678 = vmatpush1.bf16.msra.mxu0 %v501
    %679 = vmatprep.subr.bf16.mxu0 %v510
    %680 = vmatpush1.bf16.msra.mxu0 %v509
    %681 = vmatprep.subr.bf16.mxu0 %v518
    %682 = vmatpush1.bf16.msra.mxu0 %v517
    %683 = vmatprep.subr.bf16.mxu0 0
    %684 = vmatpush1.bf16.msra.mxu0 0
    %685 = vmatprep.subr.bf16.mxu0 0
    %686 = vmatpush1.bf16.msra.mxu0 0
    %687 = vmatprep.subr.bf16.mxu0 0
    %688 = vmatpush1.bf16.msra.mxu0 0
    %689 = vmatprep.subr.bf16.mxu0 0
    %690 = vmatpush1.bf16.msra.mxu0 0
    %691 = vmatprep.subr.bf16.mxu0 0
    %692 = vmatpush1.bf16.msra.mxu0 0
    %693 = vmatprep.subr.bf16.mxu0 0
    %694 = vmatpush1.bf16.msra.mxu0 0
    %695 = vmatprep.subr.bf16.mxu0 0
    %696 = vmatpush1.bf16.msra.mxu0 0
    %697 = vmatprep.subr.bf16.mxu0 0
    %698 = vmatpush1.bf16.msra.mxu0 0
    %699 = vmatprep.mubr.bf16.mxu0 0
    %700 = vmatmul.mubr.bf16.gmra.mrb[0].mxu0 %v263
    %v701 = vpop.f32.mrb[0].mxu0
    %v702 = vadd.f32 %v212, %v701
    %v703 = vpop.f32.mrb[0].mxu0
    %v704 = vadd.f32 %v216, %v703
    %v705 = vpop.f32.mrb[0].mxu0
    %v706 = vpop.f32.mrb[0].mxu0
    %707 = vdwg.mxu0
    %708 = vmatprep.subr.bf16.mxu0 %v464
    %709 = vmatpush1.bf16.msra.mxu0 %v463
    %710 = vmatprep.subr.bf16.mxu0 %v472
    %711 = vmatpush1.bf16.msra.mxu0 %v471
    %712 = vmatprep.subr.bf16.mxu0 %v480
    %713 = vmatpush1.bf16.msra.mxu0 %v479
    %714 = vmatprep.subr.bf16.mxu0 %v488
    %715 = vmatpush1.bf16.msra.mxu0 %v487
    %716 = vmatprep.subr.bf16.mxu0 %v496
    %717 = vmatpush1.bf16.msra.mxu0 %v495
    %718 = vmatprep.subr.bf16.mxu0 %v504
    %719 = vmatpush1.bf16.msra.mxu0 %v503
    %720 = vmatprep.subr.bf16.mxu0 %v512
    %721 = vmatpush1.bf16.msra.mxu0 %v511
    %722 = vmatprep.subr.bf16.mxu0 %v520
    %723 = vmatpush1.bf16.msra.mxu0 %v519
    %724 = vmatprep.subr.bf16.mxu0 0
    %725 = vmatpush1.bf16.msra.mxu0 0
    %726 = vmatprep.subr.bf16.mxu0 0
    %727 = vmatpush1.bf16.msra.mxu0 0
    %728 = vmatprep.subr.bf16.mxu0 0
    %729 = vmatpush1.bf16.msra.mxu0 0
    %730 = vmatprep.subr.bf16.mxu0 0
    %731 = vmatpush1.bf16.msra.mxu0 0
    %732 = vmatprep.subr.bf16.mxu0 0
    %733 = vmatpush1.bf16.msra.mxu0 0
    %734 = vmatprep.subr.bf16.mxu0 0
    %735 = vmatpush1.bf16.msra.mxu0 0
    %736 = vmatprep.subr.bf16.mxu0 0
    %737 = vmatpush1.bf16.msra.mxu0 0
    %738 = vmatprep.subr.bf16.mxu0 0
    %739 = vmatpush1.bf16.msra.mxu0 0
    %740 = vmatprep.mubr.bf16.mxu0 0
    %741 = vmatmul.mubr.bf16.gmra.mrb[0].mxu0 %v263
    %v742 = vpop.f32.mrb[0].mxu0
    %v743 = vadd.f32 %v220, %v742
    %v744 = vpop.f32.mrb[0].mxu0
    %v745 = vadd.f32 %v224, %v744
    %v746 = vpop.f32.mrb[0].mxu0
    %v747 = vpop.f32.mrb[0].mxu0
    %748 = vdwg.mxu0
    %749 = vst [vmem:[#allocation8] sm:$0xff] %v620
    %750 = vst [vmem:[#allocation8 + $0x8] sm:$0xff] %v622
    %751 = vst [vmem:[#allocation8 + $0x10] sm:$0xff] %v661
    %752 = vst [vmem:[#allocation8 + $0x18] sm:$0xff] %v663
    %753 = vst [vmem:[#allocation8 + $0x20] sm:$0xff] %v702
    %754 = vst [vmem:[#allocation8 + $0x28] sm:$0xff] %v704
    %755 = vst [vmem:[#allocation8 + $0x30] sm:$0xff] %v743
    %756 = vst [vmem:[#allocation8 + $0x38] sm:$0xff] %v745
    // Predicated region
    $region26: #{tpu_custom_call.1} parent=1 // pred_check
      _
    $region27: #{tpu_custom_call.1} parent=1 // pred_check_branch
      %758 = sbr.rel (0) target = $region29
    $region28: #{tpu_custom_call.1} parent=1 // pred_region
      %s760 = ssub.s32 1024, 1024
      %761 = vsyncadd [#allocation4], %s760
      %s763 = sshll.u32 [#allocation8], 4
      %s764 = int_to_ptr.vmem [resolvable:$true] %s763
      %766 = dma.vmem_to_hbm [thread:$0]  %s764, 1024, %s3, [#allocation4]
    $region29: #{tpu_custom_call.1} parent=1 // pred_fallthru
      _
    // Predicated region
    $region30: #{tpu_custom_call.1} parent=1 // pred_check
      _
    $region31: #{tpu_custom_call.1} parent=1 // pred_check_branch
      %768 = sbr.rel (0) target = $region33
    $region32: #{tpu_custom_call.1} parent=1 // pred_region
      %769 = dma.done [#allocation4], 1024
    $region33: #{tpu_custom_call.1} parent=1 // pred_fallthru
      _
    %770 = vsyncpa [#allocation3], 1
    %771 = vsyncpa [#allocation6], 1
    %772 = vsyncpa [#allocation4], 1

</llo_original>
